<compile_context>
chip_gen: v7x
topology: tpu7x:2x2x1
jax: 0.10.0
libtpu: 0.0.40
codegen_flags: <defaults>
</compile_context>

<pallas_src>
import functools

import jax
import jax.numpy as jnp
import numpy as np
from jax.experimental import pallas as pl
from jax.experimental.pallas import tpu as pltpu

HIDDEN = 1024


def _softplus(x):
    # numerically stable softplus, matches torch.nn.functional.softplus
    return jnp.maximum(x, 0.0) + jnp.log1p(jnp.exp(-jnp.abs(x)))


def _round_up(x, m):
    return ((x + m - 1) // m) * m


def _device_kind():
    try:
        return jax.devices()[0].device_kind.lower()
    except Exception:
        return ""


def logsnr_kernel(t_ref, wc_ref, w3_ref, ab_ref, out_ref, *, compute_dtype):
    """out = b' + a'*t + w3' @ tanh(w2'*t + c2')   (all constants pre-folded).

    t_ref:  (1, BM)      lane-dense time row (f32)
    wc_ref: (HIDDEN, 2)  column 0 = w2', column 1 = c2' (hidden dim on sublanes)
    w3_ref: (8, HIDDEN)  row 0 = w3', rows 1..7 zero (sublane-aligned MXU LHS)
    ab_ref: (2,) SMEM    [a', b'] scalars
    out_ref:(1, BM)      lane-dense output row (unmasked stores)
    """
    t = t_ref[...]                                    # (1, BM)   f32
    w2 = wc_ref[:, 0:1]                               # (H, 1)
    c2 = wc_ref[:, 1:2]                               # (H, 1)
    h = w2 * t + c2                                   # (H, BM)   2 VALU ops/elem
    th = jnp.tanh(h.astype(compute_dtype))            # (H, BM)   1 EUP push/elem
    # Weighted reduction over HIDDEN on the (otherwise idle) MXU; f32 accumulation.
    p = jnp.dot(w3_ref[...], th, preferred_element_type=jnp.float32)   # (8, BM)
    out_ref[...] = ab_ref[1] + ab_ref[0] * t + p[0:1, :]               # (1, BM)


def init_params(key):
    """Deterministic synthetic parameters matching LogSNR.__init__ shapes."""
    k1key, k2key, k3key = jax.random.split(key, 3)

    def xavier_normal(k, shape):
        fan_in, fan_out = shape
        std = (2.0 / (fan_in + fan_out)) ** 0.5
        return std * jax.random.normal(k, shape, jnp.float32)

    k1 = xavier_normal(k1key, (1, 1))
    b1 = jnp.zeros((1,), jnp.float32)
    k2 = xavier_normal(k2key, (1, HIDDEN))
    b2 = jnp.zeros((HIDDEN,), jnp.float32)
    k3 = xavier_normal(k3key, (HIDDEN, 1))
    b3 = jnp.zeros((1,), jnp.float32)
    gamma_min = jnp.array([-10.0], jnp.float32)
    gamma_gap = jnp.array([20.0], jnp.float32)
    return (k1, b1, k2, b2, k3, b3, gamma_min, gamma_gap)


def logsnr_forward(t, params, *, block_m=None, use_bf16=None):
    """Pallas-backed LogSNR.forward: t is 1-D [N] float32, returns 1-D [N] float32."""
    k1, b1, k2, b2, k3, b3, gmin, ggap = params
    sp = _softplus

    kind = _device_kind()
    is_v7 = "v7" in kind
    if use_bf16 is None:
        # bf16 VPU/EUP/MXU exist on v6e / v7x; v5e (and older) stay f32.
        use_bf16 = ("v6" in kind) or is_v7
    compute_dtype = jnp.bfloat16 if use_bf16 else jnp.float32

    # ---- grid-invariant parameter transforms (hoisted out of the kernel) ----
    sp_k1 = sp(k1)[0, 0]                        # scalar
    sp_b1 = sp(b1)[0]                           # scalar
    sp_k2 = sp(k2).reshape(HIDDEN)              # (H,)
    sp_b2 = sp(b2).reshape(HIDDEN)              # (H,)
    sp_k3 = sp(k3).reshape(HIDDEN)              # (H,)
    sp_b3 = sp(b3)[0]                           # scalar
    sp_gg = sp(ggap)[0]                         # scalar

    # ---- schedule anchors at t=0 / t=1 (2 rows of plain JAX) ---------------
    t01 = jnp.array([[0.0], [1.0]], jnp.float32)
    l1a = t01 * sp_k1 + sp_b1                                         # (2, 1)
    l2a = jax.nn.sigmoid(l1a * sp_k2[None, :] + sp_b2[None, :])       # (2, H)
    sa = jnp.squeeze(l1a, -1) + jnp.sum(l2a * sp_k3[None, :], axis=-1) + sp_b3
    s0, s1 = sa[0], sa[1]

    scale = sp_gg / (s1 - s0)
    offset = gmin[0] - scale * s0

    # ---- fold normalization + sigmoid affine + negation into params --------
    w2 = sp_k1 * sp_k2                          # (H,)
    c2 = sp_b1 * sp_k2 + sp_b2                  # (H,)
    w3 = scale * sp_k3                          # (H,)
    a = scale * sp_k1
    b = offset + scale * (sp_b1 + sp_b3)

    w2h = 0.5 * w2                              # tanh-argument fold
    c2h = 0.5 * c2
    w3h = -0.5 * w3                             # absorbs 0.5*tanh and the negation
    a_f = -a
    b_f = -(b + 0.5 * jnp.sum(w3))

    wc = jnp.stack([w2h, c2h], axis=-1).astype(jnp.float32)            # (H, 2)
    w3_slab = jnp.zeros((8, HIDDEN), jnp.float32).at[0].set(w3h)       # (8, H)
    w3_slab = w3_slab.astype(compute_dtype)
    ab = jnp.stack([a_f, b_f]).astype(jnp.float32)                     # (2,)

    # ---- lane-dense tiling over N -------------------------------------------
    n = int(t.shape[0])
    if block_m is None:
        # v7x: only 64 MiB VMEM -> cap the tile; v5e/v6e: amortize per-step overhead.
        block_m = 1024 if is_v7 else 2048
    bm = max(128, min(_round_up(block_m, 128), _round_up(n, 128)))
    n_pad = _round_up(n, bm)
    t_row = jnp.pad(t.astype(jnp.float32), (0, n_pad - n)).reshape(1, n_pad)

    itemsize = jnp.dtype(compute_dtype).itemsize
    vmem_cap = (40 << 20) if is_v7 else (96 << 20)
    vmem_est = HIDDEN * bm * (12 + itemsize) + (16 << 20)
    vmem_limit = int(min(vmem_cap, max(32 << 20, vmem_est)))

    kernel = functools.partial(logsnr_kernel, compute_dtype=compute_dtype)
    out = pl.pallas_call(
        kernel,
        out_shape=jax.ShapeDtypeStruct((1, n_pad), jnp.float32),
        grid_spec=pltpu.PrefetchScalarGridSpec(
            num_scalar_prefetch=0,
            grid=(n_pad // bm,),
            in_specs=[
                pl.BlockSpec((1, bm), lambda i: (0, i)),               # t row
                pl.BlockSpec((HIDDEN, 2), lambda i: (0, 0)),           # [w2', c2']
                pl.BlockSpec((8, HIDDEN), lambda i: (0, 0)),           # w3' slab
                pl.BlockSpec(memory_space=pltpu.MemorySpace.SMEM),     # [a', b']
            ],
            out_specs=pl.BlockSpec((1, bm), lambda i: (0, i)),
        ),
        compiler_params=pltpu.CompilerParams(
            dimension_semantics=("parallel",),
            vmem_limit_bytes=vmem_limit,
        ),
    )(t_row, wc, w3_slab, ab)
    return out[0, :n]


def logsnr_ref(t, params):
    """Pure-JAX reference mirroring the PyTorch forward exactly (no folding)."""
    k1, b1, k2, b2, k3, b3, gmin, ggap = params
    sp = _softplus
    tt = jnp.concatenate([jnp.array([0.0, 1.0], jnp.float32),
                          t.astype(jnp.float32)])[:, None]
    l1 = tt * sp(k1)[0, 0] + sp(b1)[0]                                  # PosDense_1
    l2 = jax.nn.sigmoid(l1 * sp(k2).reshape(1, HIDDEN)
                        + sp(b2).reshape(1, HIDDEN))                    # PosDense_2
    p3 = jnp.sum(l2 * sp(k3).reshape(1, HIDDEN), axis=-1,
                 keepdims=True) + sp(b3)[0]                             # PosDense_3
    schedule = jnp.squeeze(l1 + p3, axis=-1)
    s0, s1, sched = schedule[0], schedule[1], schedule[2:]
    norm = (sched - s0) / (s1 - s0)
    return -(gmin + sp(ggap) * norm)


def _check(out, ref, tol):
    np.testing.assert_allclose(np.asarray(out), np.asarray(ref), rtol=tol, atol=tol)


if __name__ == "__main__":
    key = jax.random.PRNGKey(0)
    pkey, tkey = jax.random.split(key)
    params = init_params(pkey)

    # f32 path (tight tolerance; works on every chip).  The schedule values are
    # O(500) and normalized by (s1 - s0), so f32 reduction-order noise is
    # amplified -> check to ~2e-3 on O(10) outputs.
    t_small = jax.random.uniform(tkey, (8,), jnp.float32)
    out_small = logsnr_forward(t_small, params, use_bf16=False)
    jax.block_until_ready(out_small)
    assert out_small.shape == (8,), out_small.shape
    _check(out_small, logsnr_ref(t_small, params), 2e-3)

    # Multi-block case: exercises the 1-D grid and the padded partial last block.
    t_big = jax.random.uniform(jax.random.PRNGKey(1), (200,), jnp.float32)
    out_big = logsnr_forward(t_big, params, block_m=128, use_bf16=False)
    jax.block_until_ready(out_big)
    assert out_big.shape == (200,), out_big.shape
    _check(out_big, logsnr_ref(t_big, params), 2e-3)

    # bf16 activation path (only where bf16 EUP/MXU exist: v6e / v7x).
    kind = _device_kind()
    if ("v6" in kind) or ("v7" in kind):
        out_bf = logsnr_forward(t_big, params, block_m=128, use_bf16=True)
        jax.block_until_ready(out_bf)
        # bf16 tanh error is amplified by the 1024-term weighted sum -> looser tol.
        _check(out_bf, logsnr_ref(t_big, params), 5e-2)

    print("KERNEL_OK")
</pallas_src>

<mosaic_0001>
module attributes {stable_mosaic.version = 11 : i64} {
  func.func @logsnr_kernel(%arg0: i32, %arg1: memref<1x128xf32, #tpu.memory_space<vmem>>, %arg2: memref<1024x2xf32, #tpu.memory_space<vmem>>, %arg3: memref<8x1024xf32, #tpu.memory_space<vmem>>, %arg4: memref<2xf32, #tpu.memory_space<smem>>, %arg5: memref<1x128xf32, #tpu.memory_space<vmem>>) attributes {dimension_semantics = [#tpu.dimension_semantics<parallel>], iteration_bounds = array<i64: 1>, scalar_prefetch = 0 : i64, scratch_operands = 0 : i64, tpu.core_type = #tpu.core_type<tc>, window_params = [{transform_indices = @transform_0, window_bounds = array<i64: 1, 128>}, {pipeline_mode = #tpu.pipeline_mode<synchronous>, transform_indices = @transform_1, window_bounds = array<i64: 1024, 2>}, {pipeline_mode = #tpu.pipeline_mode<synchronous>, transform_indices = @transform_2, window_bounds = array<i64: 8, 1024>}, {transform_indices = @transform_3, window_bounds = array<i64: 2>}, {transform_indices = @transform_4, window_bounds = array<i64: 1, 128>}]} {
    %c0 = arith.constant 0 : index
    %c0_0 = arith.constant 0 : index
    %0 = vector.load %arg1[%c0, %c0_0] : memref<1x128xf32, #tpu.memory_space<vmem>>, vector<1x128xf32>
    %c0_1 = arith.constant 0 : index
    %c0_2 = arith.constant 0 : index
    %1 = vector.load %arg2[%c0_1, %c0_2] : memref<1024x2xf32, #tpu.memory_space<vmem>>, vector<1024x1xf32>
    %c0_3 = arith.constant 0 : index
    %c1 = arith.constant 1 : index
    %2 = vector.load %arg2[%c0_3, %c1] : memref<1024x2xf32, #tpu.memory_space<vmem>>, vector<1024x1xf32>
    %3 = vector.broadcast %1 : vector<1024x1xf32> to vector<1024x128xf32>
    %4 = vector.broadcast %0 : vector<1x128xf32> to vector<1024x128xf32>
    %5 = arith.mulf %3, %4 : vector<1024x128xf32>
    %6 = vector.broadcast %2 : vector<1024x1xf32> to vector<1024x128xf32>
    %7 = arith.addf %5, %6 : vector<1024x128xf32>
    %8 = math.tanh %7 : vector<1024x128xf32>
    %c0_4 = arith.constant 0 : index
    %c0_5 = arith.constant 0 : index
    %9 = vector.load %arg3[%c0_4, %c0_5] : memref<8x1024xf32, #tpu.memory_space<vmem>>, vector<8x1024xf32>
    %cst = arith.constant dense<0.000000e+00> : vector<8x128xf32>
    %10 = tpu.matmul %9, %8, %cst {dimension_numbers = #tpu.dot_dimension_numbers<[1], [0], [0], [1], [0, 0, 1, 1], [], []>} : vector<8x1024xf32>, vector<1024x128xf32>, vector<8x128xf32> -> vector<8x128xf32>
    %c1_6 = arith.constant 1 : index
    %11 = memref.load %arg4[%c1_6] : memref<2xf32, #tpu.memory_space<smem>>
    %c0_7 = arith.constant 0 : index
    %12 = memref.load %arg4[%c0_7] : memref<2xf32, #tpu.memory_space<smem>>
    %13 = vector.broadcast %12 : f32 to vector<1x128xf32>
    %14 = arith.mulf %13, %0 : vector<1x128xf32>
    %15 = vector.broadcast %11 : f32 to vector<1x128xf32>
    %16 = arith.addf %15, %14 : vector<1x128xf32>
    %17 = vector.extract_strided_slice %10 {offsets = [0, 0], sizes = [1, 128], strides = [1, 1]} : vector<8x128xf32> to vector<1x128xf32>
    %18 = arith.addf %16, %17 : vector<1x128xf32>
    %c0_8 = arith.constant 0 : index
    %c0_9 = arith.constant 0 : index
    %19 = vector.load %arg5[%c0_8, %c0_9] : memref<1x128xf32, #tpu.memory_space<vmem>>, vector<1x128xf32>
    tpu.vector_store %arg5[%c0_8, %c0_9], %18 {strides = array<i32>} : memref<1x128xf32, #tpu.memory_space<vmem>>, vector<1x128xf32>,
    return
  }
  func.func @transform_0(%arg0: i32) -> (i32, i32) {
    %c0_i32 = arith.constant 0 : i32
    %c0_i32_0 = arith.constant 0 : i32
    return %c0_i32, %arg0 : i32, i32
  }
  func.func @transform_1(%arg0: i32) -> (i32, i32) {
    %c0_i32 = arith.constant 0 : i32
    %c0_i32_0 = arith.constant 0 : i32
    %c0_i32_1 = arith.constant 0 : i32
    return %c0_i32, %c0_i32_0 : i32, i32
  }
  func.func @transform_2(%arg0: i32) -> (i32, i32) {
    %c0_i32 = arith.constant 0 : i32
    %c0_i32_0 = arith.constant 0 : i32
    %c0_i32_1 = arith.constant 0 : i32
    return %c0_i32, %c0_i32_0 : i32, i32
  }
  func.func @transform_3(%arg0: i32) -> i32 {
    %c0_i32 = arith.constant 0 : i32
    %c0_i32_0 = arith.constant 0 : i32
    return %c0_i32 : i32
  }
  func.func @transform_4(%arg0: i32) -> (i32, i32) {
    %c0_i32 = arith.constant 0 : i32
    %c0_i32_0 = arith.constant 0 : i32
    return %c0_i32, %arg0 : i32, i32
  }
}

</mosaic_0001>

<llo_original>
// kernel: tpu_custom_call.1
$region0: #{tpu_custom_call.1}
  #allocation0 [shape = 'u32[]', space=smem, size = 0x4, offset = 0x4, fixed_abs, tag = 'smem constant byte address 0x4 - core index']
  #allocation1 [shape = 'u32[144,128]{1,0:T(1,128)}', space=vmem, size = 0x12000, scoped, tag = 'internal scratch']
  %s0 = inlined_call_operand.vmem [shape: f32[1,128], index: 0, kind: input, shape index: {}]
  %s1 = inlined_call_operand.vmem [shape: f32[1024,2], index: 1, kind: input, shape index: {}]
  %s2 = inlined_call_operand.vmem [shape: f32[8,1024], index: 2, kind: input, shape index: {}]
  %s3 = inlined_call_operand.vmem [shape: f32[2], index: 3, kind: input, shape index: {}]
  %s4 = inlined_call_operand.hbm [shape: f32[1,128], index: 4, kind: output, shape index: {}]
  %s5 = sld [smem:[#allocation0]]
  $region30: #{tpu_custom_call.1} parent=0
    _
  %s7 = ssub.s32 1, %s5
  %s8 = scalar_select 0, %s7, %s5
  $region1: #{tpu_custom_call.1} parent=0
    #allocation2 [shape = 'u8[512]{0}', space=smem, size = 0x200, scoped, tag = 'input window, operand 3, single buffered']
    #allocation3 [shape = 's32[1]{0}', space=sflag, size = 0x4, scoped, tag = 'scoped memory for tpu_custom_call.1']
    #allocation4 [shape = 's32[1]{0}', space=sflag, size = 0x4, scoped, tag = 'scoped memory for tpu_custom_call.1']
    #allocation5 [shape = 'u8[512]{0}', space=vmem, size = 0x400, scoped, tag = 'output window, operand 0, single buffered']
    %9 = vsyncpa [#allocation4], 0
    %10 = vsyncpa [#allocation3], 0
    // Predicated region
    $region2: #{tpu_custom_call.1} parent=1 // pred_check
      _
    $region3: #{tpu_custom_call.1} parent=1 // pred_check_branch
      %12 = sbr.rel (0) target = $region5
    $region4: #{tpu_custom_call.1} parent=1 // pred_region
      _
    $region5: #{tpu_custom_call.1} parent=1 // pred_fallthru
      _
    // Predicated region
    $region6: #{tpu_custom_call.1} parent=1 // pred_check
      _
    $region7: #{tpu_custom_call.1} parent=1 // pred_check_branch
      %14 = sbr.rel (0) target = $region9
    $region8: #{tpu_custom_call.1} parent=1 // pred_region
      _
    $region9: #{tpu_custom_call.1} parent=1 // pred_fallthru
      _
    // Predicated region
    $region10: #{tpu_custom_call.1} parent=1 // pred_check
      _
    $region11: #{tpu_custom_call.1} parent=1 // pred_check_branch
      %16 = sbr.rel (0) target = $region13
    $region12: #{tpu_custom_call.1} parent=1 // pred_region
      _
    $region13: #{tpu_custom_call.1} parent=1 // pred_fallthru
      _
    // Predicated region
    $region14: #{tpu_custom_call.1} parent=1 // pred_check
      _
    $region15: #{tpu_custom_call.1} parent=1 // pred_check_branch
      %18 = sbr.rel (0) target = $region17
    $region16: #{tpu_custom_call.1} parent=1 // pred_region
      %s20 = ssub.s32 16, 16
      %21 = vsyncadd [#allocation4], %s20
      %s23 = sshll.u32 %s3, 4
      %s24 = int_to_ptr.vmem [resolvable:$true] %s23
      %26 = dma.vmem_to_smem %s24, 16, [#allocation2], [#allocation4]
    $region17: #{tpu_custom_call.1} parent=1 // pred_fallthru
      _
    // Predicated region
    $region18: #{tpu_custom_call.1} parent=1 // pred_check
      _
    $region19: #{tpu_custom_call.1} parent=1 // pred_check_branch
      %28 = sbr.rel (0) target = $region21
    $region20: #{tpu_custom_call.1} parent=1 // pred_region
      %29 = dma.done [#allocation4], 16
    $region21: #{tpu_custom_call.1} parent=1 // pred_fallthru
      _
    %30 = sfence
    %v31 = vld [vmem:[%s0] sm:$0x1]
    %v32 = vld [vmem:[%s1] sm:$0xff]
    %v33 = vld [vmem:[%s1 + $0x8] sm:$0xff]
    %v34 = vld [vmem:[%s1 + $0x10] sm:$0xff]
    %v35 = vld [vmem:[%s1 + $0x18] sm:$0xff]
    %v36 = vld [vmem:[%s1 + $0x20] sm:$0xff]
    %v37 = vld [vmem:[%s1 + $0x28] sm:$0xff]
    %v38 = vld [vmem:[%s1 + $0x30] sm:$0xff]
    %v39 = vld [vmem:[%s1 + $0x38] sm:$0xff]
    %v40 = vld [vmem:[%s1 + $0x40] sm:$0xff]
    %v41 = vld [vmem:[%s1 + $0x48] sm:$0xff]
    %v42 = vld [vmem:[%s1 + $0x50] sm:$0xff]
    %v43 = vld [vmem:[%s1 + $0x58] sm:$0xff]
    %v44 = vld [vmem:[%s1 + $0x60] sm:$0xff]
    %v45 = vld [vmem:[%s1 + $0x68] sm:$0xff]
    %v46 = vld [vmem:[%s1 + $0x70] sm:$0xff]
    %v47 = vld [vmem:[%s1 + $0x78] sm:$0xff]
    %v48 = vld [vmem:[%s1 + $0x80] sm:$0xff]
    %v49 = vld [vmem:[%s1 + $0x88] sm:$0xff]
    %v50 = vld [vmem:[%s1 + $0x90] sm:$0xff]
    %v51 = vld [vmem:[%s1 + $0x98] sm:$0xff]
    %v52 = vld [vmem:[%s1 + $0xa0] sm:$0xff]
    %v53 = vld [vmem:[%s1 + $0xa8] sm:$0xff]
    %v54 = vld [vmem:[%s1 + $0xb0] sm:$0xff]
    %v55 = vld [vmem:[%s1 + $0xb8] sm:$0xff]
    %v56 = vld [vmem:[%s1 + $0xc0] sm:$0xff]
    %v57 = vld [vmem:[%s1 + $0xc8] sm:$0xff]
    %v58 = vld [vmem:[%s1 + $0xd0] sm:$0xff]
    %v59 = vld [vmem:[%s1 + $0xd8] sm:$0xff]
    %v60 = vld [vmem:[%s1 + $0xe0] sm:$0xff]
    %v61 = vld [vmem:[%s1 + $0xe8] sm:$0xff]
    %v62 = vld [vmem:[%s1 + $0xf0] sm:$0xff]
    %v63 = vld [vmem:[%s1 + $0xf8] sm:$0xff]
    %v64 = vld [vmem:[%s1 + $0x100] sm:$0xff]
    %v65 = vld [vmem:[%s1 + $0x108] sm:$0xff]
    %v66 = vld [vmem:[%s1 + $0x110] sm:$0xff]
    %v67 = vld [vmem:[%s1 + $0x118] sm:$0xff]
    %v68 = vld [vmem:[%s1 + $0x120] sm:$0xff]
    %v69 = vld [vmem:[%s1 + $0x128] sm:$0xff]
    %v70 = vld [vmem:[%s1 + $0x130] sm:$0xff]
    %v71 = vld [vmem:[%s1 + $0x138] sm:$0xff]
    %v72 = vld [vmem:[%s1 + $0x140] sm:$0xff]
    %v73 = vld [vmem:[%s1 + $0x148] sm:$0xff]
    %v74 = vld [vmem:[%s1 + $0x150] sm:$0xff]
    %v75 = vld [vmem:[%s1 + $0x158] sm:$0xff]
    %v76 = vld [vmem:[%s1 + $0x160] sm:$0xff]
    %v77 = vld [vmem:[%s1 + $0x168] sm:$0xff]
    %v78 = vld [vmem:[%s1 + $0x170] sm:$0xff]
    %v79 = vld [vmem:[%s1 + $0x178] sm:$0xff]
    %v80 = vld [vmem:[%s1 + $0x180] sm:$0xff]
    %v81 = vld [vmem:[%s1 + $0x188] sm:$0xff]
    %v82 = vld [vmem:[%s1 + $0x190] sm:$0xff]
    %v83 = vld [vmem:[%s1 + $0x198] sm:$0xff]
    %v84 = vld [vmem:[%s1 + $0x1a0] sm:$0xff]
    %v85 = vld [vmem:[%s1 + $0x1a8] sm:$0xff]
    %v86 = vld [vmem:[%s1 + $0x1b0] sm:$0xff]
    %v87 = vld [vmem:[%s1 + $0x1b8] sm:$0xff]
    %v88 = vld [vmem:[%s1 + $0x1c0] sm:$0xff]
    %v89 = vld [vmem:[%s1 + $0x1c8] sm:$0xff]
    %v90 = vld [vmem:[%s1 + $0x1d0] sm:$0xff]
    %v91 = vld [vmem:[%s1 + $0x1d8] sm:$0xff]
    %v92 = vld [vmem:[%s1 + $0x1e0] sm:$0xff]
    %v93 = vld [vmem:[%s1 + $0x1e8] sm:$0xff]
    %v94 = vld [vmem:[%s1 + $0x1f0] sm:$0xff]
    %v95 = vld [vmem:[%s1 + $0x1f8] sm:$0xff]
    %v96 = vld [vmem:[%s1 + $0x200] sm:$0xff]
    %v97 = vld [vmem:[%s1 + $0x208] sm:$0xff]
    %v98 = vld [vmem:[%s1 + $0x210] sm:$0xff]
    %v99 = vld [vmem:[%s1 + $0x218] sm:$0xff]
    %v100 = vld [vmem:[%s1 + $0x220] sm:$0xff]
    %v101 = vld [vmem:[%s1 + $0x228] sm:$0xff]
    %v102 = vld [vmem:[%s1 + $0x230] sm:$0xff]
    %v103 = vld [vmem:[%s1 + $0x238] sm:$0xff]
    %v104 = vld [vmem:[%s1 + $0x240] sm:$0xff]
    %v105 = vld [vmem:[%s1 + $0x248] sm:$0xff]
    %v106 = vld [vmem:[%s1 + $0x250] sm:$0xff]
    %v107 = vld [vmem:[%s1 + $0x258] sm:$0xff]
    %v108 = vld [vmem:[%s1 + $0x260] sm:$0xff]
    %v109 = vld [vmem:[%s1 + $0x268] sm:$0xff]
    %v110 = vld [vmem:[%s1 + $0x270] sm:$0xff]
    %v111 = vld [vmem:[%s1 + $0x278] sm:$0xff]
    %v112 = vld [vmem:[%s1 + $0x280] sm:$0xff]
    %v113 = vld [vmem:[%s1 + $0x288] sm:$0xff]
    %v114 = vld [vmem:[%s1 + $0x290] sm:$0xff]
    %v115 = vld [vmem:[%s1 + $0x298] sm:$0xff]
    %v116 = vld [vmem:[%s1 + $0x2a0] sm:$0xff]
    %v117 = vld [vmem:[%s1 + $0x2a8] sm:$0xff]
    %v118 = vld [vmem:[%s1 + $0x2b0] sm:$0xff]
    %v119 = vld [vmem:[%s1 + $0x2b8] sm:$0xff]
    %v120 = vld [vmem:[%s1 + $0x2c0] sm:$0xff]
    %v121 = vld [vmem:[%s1 + $0x2c8] sm:$0xff]
    %v122 = vld [vmem:[%s1 + $0x2d0] sm:$0xff]
    %v123 = vld [vmem:[%s1 + $0x2d8] sm:$0xff]
    %v124 = vld [vmem:[%s1 + $0x2e0] sm:$0xff]
    %v125 = vld [vmem:[%s1 + $0x2e8] sm:$0xff]
    %v126 = vld [vmem:[%s1 + $0x2f0] sm:$0xff]
    %v127 = vld [vmem:[%s1 + $0x2f8] sm:$0xff]
    %v128 = vld [vmem:[%s1 + $0x300] sm:$0xff]
    %v129 = vld [vmem:[%s1 + $0x308] sm:$0xff]
    %v130 = vld [vmem:[%s1 + $0x310] sm:$0xff]
    %v131 = vld [vmem:[%s1 + $0x318] sm:$0xff]
    %v132 = vld [vmem:[%s1 + $0x320] sm:$0xff]
    %v133 = vld [vmem:[%s1 + $0x328] sm:$0xff]
    %v134 = vld [vmem:[%s1 + $0x330] sm:$0xff]
    %v135 = vld [vmem:[%s1 + $0x338] sm:$0xff]
    %v136 = vld [vmem:[%s1 + $0x340] sm:$0xff]
    %v137 = vld [vmem:[%s1 + $0x348] sm:$0xff]
    %v138 = vld [vmem:[%s1 + $0x350] sm:$0xff]
    %v139 = vld [vmem:[%s1 + $0x358] sm:$0xff]
    %v140 = vld [vmem:[%s1 + $0x360] sm:$0xff]
    %v141 = vld [vmem:[%s1 + $0x368] sm:$0xff]
    %v142 = vld [vmem:[%s1 + $0x370] sm:$0xff]
    %v143 = vld [vmem:[%s1 + $0x378] sm:$0xff]
    %v144 = vld [vmem:[%s1 + $0x380] sm:$0xff]
    %v145 = vld [vmem:[%s1 + $0x388] sm:$0xff]
    %v146 = vld [vmem:[%s1 + $0x390] sm:$0xff]
    %v147 = vld [vmem:[%s1 + $0x398] sm:$0xff]
    %v148 = vld [vmem:[%s1 + $0x3a0] sm:$0xff]
    %v149 = vld [vmem:[%s1 + $0x3a8] sm:$0xff]
    %v150 = vld [vmem:[%s1 + $0x3b0] sm:$0xff]
    %v151 = vld [vmem:[%s1 + $0x3b8] sm:$0xff]
    %v152 = vld [vmem:[%s1 + $0x3c0] sm:$0xff]
    %v153 = vld [vmem:[%s1 + $0x3c8] sm:$0xff]
    %v154 = vld [vmem:[%s1 + $0x3d0] sm:$0xff]
    %v155 = vld [vmem:[%s1 + $0x3d8] sm:$0xff]
    %v156 = vld [vmem:[%s1 + $0x3e0] sm:$0xff]
    %v157 = vld [vmem:[%s1 + $0x3e8] sm:$0xff]
    %v158 = vld [vmem:[%s1 + $0x3f0] sm:$0xff]
    %v159 = vld [vmem:[%s1 + $0x3f8] sm:$0xff]
    %161 = vset.pattern.permute.xlu0 0
    %162 = vperm.xlu0 %161, %v32
    %v163 = vpop.permute.xlu0 %162
    %166 = vset.pattern.permute.xlu0 0
    %167 = vperm.xlu0 %166, %v33
    %v168 = vpop.permute.xlu0 %167
    %171 = vset.pattern.permute.xlu0 0
    %172 = vperm.xlu0 %171, %v34
    %v173 = vpop.permute.xlu0 %172
    %176 = vset.pattern.permute.xlu0 0
    %177 = vperm.xlu0 %176, %v35
    %v178 = vpop.permute.xlu0 %177
    %181 = vset.pattern.permute.xlu0 0
    %182 = vperm.xlu0 %181, %v36
    %v183 = vpop.permute.xlu0 %182
    %186 = vset.pattern.permute.xlu0 0
    %187 = vperm.xlu0 %186, %v37
    %v188 = vpop.permute.xlu0 %187
    %191 = vset.pattern.permute.xlu0 0
    %192 = vperm.xlu0 %191, %v38
    %v193 = vpop.permute.xlu0 %192
    %196 = vset.pattern.permute.xlu0 0
    %197 = vperm.xlu0 %196, %v39
    %v198 = vpop.permute.xlu0 %197
    %201 = vset.pattern.permute.xlu0 0
    %202 = vperm.xlu0 %201, %v40
    %v203 = vpop.permute.xlu0 %202
    %206 = vset.pattern.permute.xlu0 0
    %207 = vperm.xlu0 %206, %v41
    %v208 = vpop.permute.xlu0 %207
    %211 = vset.pattern.permute.xlu0 0
    %212 = vperm.xlu0 %211, %v42
    %v213 = vpop.permute.xlu0 %212
    %216 = vset.pattern.permute.xlu0 0
    %217 = vperm.xlu0 %216, %v43
    %v218 = vpop.permute.xlu0 %217
    %221 = vset.pattern.permute.xlu0 0
    %222 = vperm.xlu0 %221, %v44
    %v223 = vpop.permute.xlu0 %222
    %226 = vset.pattern.permute.xlu0 0
    %227 = vperm.xlu0 %226, %v45
    %v228 = vpop.permute.xlu0 %227
    %231 = vset.pattern.permute.xlu0 0
    %232 = vperm.xlu0 %231, %v46
    %v233 = vpop.permute.xlu0 %232
    %236 = vset.pattern.permute.xlu0 0
    %237 = vperm.xlu0 %236, %v47
    %v238 = vpop.permute.xlu0 %237
    %241 = vset.pattern.permute.xlu0 0
    %242 = vperm.xlu0 %241, %v48
    %v243 = vpop.permute.xlu0 %242
    %246 = vset.pattern.permute.xlu0 0
    %247 = vperm.xlu0 %246, %v49
    %v248 = vpop.permute.xlu0 %247
    %251 = vset.pattern.permute.xlu0 0
    %252 = vperm.xlu0 %251, %v50
    %v253 = vpop.permute.xlu0 %252
    %256 = vset.pattern.permute.xlu0 0
    %257 = vperm.xlu0 %256, %v51
    %v258 = vpop.permute.xlu0 %257
    %261 = vset.pattern.permute.xlu0 0
    %262 = vperm.xlu0 %261, %v52
    %v263 = vpop.permute.xlu0 %262
    %266 = vset.pattern.permute.xlu0 0
    %267 = vperm.xlu0 %266, %v53
    %v268 = vpop.permute.xlu0 %267
    %271 = vset.pattern.permute.xlu0 0
    %272 = vperm.xlu0 %271, %v54
    %v273 = vpop.permute.xlu0 %272
    %276 = vset.pattern.permute.xlu0 0
    %277 = vperm.xlu0 %276, %v55
    %v278 = vpop.permute.xlu0 %277
    %281 = vset.pattern.permute.xlu0 0
    %282 = vperm.xlu0 %281, %v56
    %v283 = vpop.permute.xlu0 %282
    %286 = vset.pattern.permute.xlu0 0
    %287 = vperm.xlu0 %286, %v57
    %v288 = vpop.permute.xlu0 %287
    %291 = vset.pattern.permute.xlu0 0
    %292 = vperm.xlu0 %291, %v58
    %v293 = vpop.permute.xlu0 %292
    %296 = vset.pattern.permute.xlu0 0
    %297 = vperm.xlu0 %296, %v59
    %v298 = vpop.permute.xlu0 %297
    %301 = vset.pattern.permute.xlu0 0
    %302 = vperm.xlu0 %301, %v60
    %v303 = vpop.permute.xlu0 %302
    %306 = vset.pattern.permute.xlu0 0
    %307 = vperm.xlu0 %306, %v61
    %v308 = vpop.permute.xlu0 %307
    %311 = vset.pattern.permute.xlu0 0
    %312 = vperm.xlu0 %311, %v62
    %v313 = vpop.permute.xlu0 %312
    %316 = vset.pattern.permute.xlu0 0
    %317 = vperm.xlu0 %316, %v63
    %v318 = vpop.permute.xlu0 %317
    %321 = vset.pattern.permute.xlu0 0
    %322 = vperm.xlu0 %321, %v64
    %v323 = vpop.permute.xlu0 %322
    %326 = vset.pattern.permute.xlu0 0
    %327 = vperm.xlu0 %326, %v65
    %v328 = vpop.permute.xlu0 %327
    %331 = vset.pattern.permute.xlu0 0
    %332 = vperm.xlu0 %331, %v66
    %v333 = vpop.permute.xlu0 %332
    %336 = vset.pattern.permute.xlu0 0
    %337 = vperm.xlu0 %336, %v67
    %v338 = vpop.permute.xlu0 %337
    %341 = vset.pattern.permute.xlu0 0
    %342 = vperm.xlu0 %341, %v68
    %v343 = vpop.permute.xlu0 %342
    %346 = vset.pattern.permute.xlu0 0
    %347 = vperm.xlu0 %346, %v69
    %v348 = vpop.permute.xlu0 %347
    %351 = vset.pattern.permute.xlu0 0
    %352 = vperm.xlu0 %351, %v70
    %v353 = vpop.permute.xlu0 %352
    %356 = vset.pattern.permute.xlu0 0
    %357 = vperm.xlu0 %356, %v71
    %v358 = vpop.permute.xlu0 %357
    %361 = vset.pattern.permute.xlu0 0
    %362 = vperm.xlu0 %361, %v72
    %v363 = vpop.permute.xlu0 %362
    %366 = vset.pattern.permute.xlu0 0
    %367 = vperm.xlu0 %366, %v73
    %v368 = vpop.permute.xlu0 %367
    %371 = vset.pattern.permute.xlu0 0
    %372 = vperm.xlu0 %371, %v74
    %v373 = vpop.permute.xlu0 %372
    %376 = vset.pattern.permute.xlu0 0
    %377 = vperm.xlu0 %376, %v75
    %v378 = vpop.permute.xlu0 %377
    %381 = vset.pattern.permute.xlu0 0
    %382 = vperm.xlu0 %381, %v76
    %v383 = vpop.permute.xlu0 %382
    %386 = vset.pattern.permute.xlu0 0
    %387 = vperm.xlu0 %386, %v77
    %v388 = vpop.permute.xlu0 %387
    %391 = vset.pattern.permute.xlu0 0
    %392 = vperm.xlu0 %391, %v78
    %v393 = vpop.permute.xlu0 %392
    %396 = vset.pattern.permute.xlu0 0
    %397 = vperm.xlu0 %396, %v79
    %v398 = vpop.permute.xlu0 %397
    %401 = vset.pattern.permute.xlu0 0
    %402 = vperm.xlu0 %401, %v80
    %v403 = vpop.permute.xlu0 %402
    %406 = vset.pattern.permute.xlu0 0
    %407 = vperm.xlu0 %406, %v81
    %v408 = vpop.permute.xlu0 %407
    %411 = vset.pattern.permute.xlu0 0
    %412 = vperm.xlu0 %411, %v82
    %v413 = vpop.permute.xlu0 %412
    %416 = vset.pattern.permute.xlu0 0
    %417 = vperm.xlu0 %416, %v83
    %v418 = vpop.permute.xlu0 %417
    %421 = vset.pattern.permute.xlu0 0
    %422 = vperm.xlu0 %421, %v84
    %v423 = vpop.permute.xlu0 %422
    %426 = vset.pattern.permute.xlu0 0
    %427 = vperm.xlu0 %426, %v85
    %v428 = vpop.permute.xlu0 %427
    %431 = vset.pattern.permute.xlu0 0
    %432 = vperm.xlu0 %431, %v86
    %v433 = vpop.permute.xlu0 %432
    %436 = vset.pattern.permute.xlu0 0
    %437 = vperm.xlu0 %436, %v87
    %v438 = vpop.permute.xlu0 %437
    %441 = vset.pattern.permute.xlu0 0
    %442 = vperm.xlu0 %441, %v88
    %v443 = vpop.permute.xlu0 %442
    %446 = vset.pattern.permute.xlu0 0
    %447 = vperm.xlu0 %446, %v89
    %v448 = vpop.permute.xlu0 %447
    %451 = vset.pattern.permute.xlu0 0
    %452 = vperm.xlu0 %451, %v90
    %v453 = vpop.permute.xlu0 %452
    %456 = vset.pattern.permute.xlu0 0
    %457 = vperm.xlu0 %456, %v91
    %v458 = vpop.permute.xlu0 %457
    %461 = vset.pattern.permute.xlu0 0
    %462 = vperm.xlu0 %461, %v92
    %v463 = vpop.permute.xlu0 %462
    %466 = vset.pattern.permute.xlu0 0
    %467 = vperm.xlu0 %466, %v93
    %v468 = vpop.permute.xlu0 %467
    %471 = vset.pattern.permute.xlu0 0
    %472 = vperm.xlu0 %471, %v94
    %v473 = vpop.permute.xlu0 %472
    %476 = vset.pattern.permute.xlu0 0
    %477 = vperm.xlu0 %476, %v95
    %v478 = vpop.permute.xlu0 %477
    %481 = vset.pattern.permute.xlu0 0
    %482 = vperm.xlu0 %481, %v96
    %v483 = vpop.permute.xlu0 %482
    %486 = vset.pattern.permute.xlu0 0
    %487 = vperm.xlu0 %486, %v97
    %v488 = vpop.permute.xlu0 %487
    %491 = vset.pattern.permute.xlu0 0
    %492 = vperm.xlu0 %491, %v98
    %v493 = vpop.permute.xlu0 %492
    %496 = vset.pattern.permute.xlu0 0
    %497 = vperm.xlu0 %496, %v99
    %v498 = vpop.permute.xlu0 %497
    %501 = vset.pattern.permute.xlu0 0
    %502 = vperm.xlu0 %501, %v100
    %v503 = vpop.permute.xlu0 %502
    %506 = vset.pattern.permute.xlu0 0
    %507 = vperm.xlu0 %506, %v101
    %v508 = vpop.permute.xlu0 %507
    %511 = vset.pattern.permute.xlu0 0
    %512 = vperm.xlu0 %511, %v102
    %v513 = vpop.permute.xlu0 %512
    %516 = vset.pattern.permute.xlu0 0
    %517 = vperm.xlu0 %516, %v103
    %v518 = vpop.permute.xlu0 %517
    %521 = vset.pattern.permute.xlu0 0
    %522 = vperm.xlu0 %521, %v104
    %v523 = vpop.permute.xlu0 %522
    %526 = vset.pattern.permute.xlu0 0
    %527 = vperm.xlu0 %526, %v105
    %v528 = vpop.permute.xlu0 %527
    %531 = vset.pattern.permute.xlu0 0
    %532 = vperm.xlu0 %531, %v106
    %v533 = vpop.permute.xlu0 %532
    %536 = vset.pattern.permute.xlu0 0
    %537 = vperm.xlu0 %536, %v107
    %v538 = vpop.permute.xlu0 %537
    %541 = vset.pattern.permute.xlu0 0
    %542 = vperm.xlu0 %541, %v108
    %v543 = vpop.permute.xlu0 %542
    %546 = vset.pattern.permute.xlu0 0
    %547 = vperm.xlu0 %546, %v109
    %v548 = vpop.permute.xlu0 %547
    %551 = vset.pattern.permute.xlu0 0
    %552 = vperm.xlu0 %551, %v110
    %v553 = vpop.permute.xlu0 %552
    %556 = vset.pattern.permute.xlu0 0
    %557 = vperm.xlu0 %556, %v111
    %v558 = vpop.permute.xlu0 %557
    %561 = vset.pattern.permute.xlu0 0
    %562 = vperm.xlu0 %561, %v112
    %v563 = vpop.permute.xlu0 %562
    %566 = vset.pattern.permute.xlu0 0
    %567 = vperm.xlu0 %566, %v113
    %v568 = vpop.permute.xlu0 %567
    %571 = vset.pattern.permute.xlu0 0
    %572 = vperm.xlu0 %571, %v114
    %v573 = vpop.permute.xlu0 %572
    %576 = vset.pattern.permute.xlu0 0
    %577 = vperm.xlu0 %576, %v115
    %v578 = vpop.permute.xlu0 %577
    %581 = vset.pattern.permute.xlu0 0
    %582 = vperm.xlu0 %581, %v116
    %v583 = vpop.permute.xlu0 %582
    %586 = vset.pattern.permute.xlu0 0
    %587 = vperm.xlu0 %586, %v117
    %v588 = vpop.permute.xlu0 %587
    %591 = vset.pattern.permute.xlu0 0
    %592 = vperm.xlu0 %591, %v118
    %v593 = vpop.permute.xlu0 %592
    %596 = vset.pattern.permute.xlu0 0
    %597 = vperm.xlu0 %596, %v119
    %v598 = vpop.permute.xlu0 %597
    %601 = vset.pattern.permute.xlu0 0
    %602 = vperm.xlu0 %601, %v120
    %v603 = vpop.permute.xlu0 %602
    %606 = vset.pattern.permute.xlu0 0
    %607 = vperm.xlu0 %606, %v121
    %v608 = vpop.permute.xlu0 %607
    %611 = vset.pattern.permute.xlu0 0
    %612 = vperm.xlu0 %611, %v122
    %v613 = vpop.permute.xlu0 %612
    %616 = vset.pattern.permute.xlu0 0
    %617 = vperm.xlu0 %616, %v123
    %v618 = vpop.permute.xlu0 %617
    %621 = vset.pattern.permute.xlu0 0
    %622 = vperm.xlu0 %621, %v124
    %v623 = vpop.permute.xlu0 %622
    %626 = vset.pattern.permute.xlu0 0
    %627 = vperm.xlu0 %626, %v125
    %v628 = vpop.permute.xlu0 %627
    %631 = vset.pattern.permute.xlu0 0
    %632 = vperm.xlu0 %631, %v126
    %v633 = vpop.permute.xlu0 %632
    %636 = vset.pattern.permute.xlu0 0
    %637 = vperm.xlu0 %636, %v127
    %v638 = vpop.permute.xlu0 %637
    %641 = vset.pattern.permute.xlu0 0
    %642 = vperm.xlu0 %641, %v128
    %v643 = vpop.permute.xlu0 %642
    %646 = vset.pattern.permute.xlu0 0
    %647 = vperm.xlu0 %646, %v129
    %v648 = vpop.permute.xlu0 %647
    %651 = vset.pattern.permute.xlu0 0
    %652 = vperm.xlu0 %651, %v130
    %v653 = vpop.permute.xlu0 %652
    %656 = vset.pattern.permute.xlu0 0
    %657 = vperm.xlu0 %656, %v131
    %v658 = vpop.permute.xlu0 %657
    %661 = vset.pattern.permute.xlu0 0
    %662 = vperm.xlu0 %661, %v132
    %v663 = vpop.permute.xlu0 %662
    %666 = vset.pattern.permute.xlu0 0
    %667 = vperm.xlu0 %666, %v133
    %v668 = vpop.permute.xlu0 %667
    %671 = vset.pattern.permute.xlu0 0
    %672 = vperm.xlu0 %671, %v134
    %v673 = vpop.permute.xlu0 %672
    %676 = vset.pattern.permute.xlu0 0
    %677 = vperm.xlu0 %676, %v135
    %v678 = vpop.permute.xlu0 %677
    %681 = vset.pattern.permute.xlu0 0
    %682 = vperm.xlu0 %681, %v136
    %v683 = vpop.permute.xlu0 %682
    %686 = vset.pattern.permute.xlu0 0
    %687 = vperm.xlu0 %686, %v137
    %v688 = vpop.permute.xlu0 %687
    %691 = vset.pattern.permute.xlu0 0
    %692 = vperm.xlu0 %691, %v138
    %v693 = vpop.permute.xlu0 %692
    %696 = vset.pattern.permute.xlu0 0
    %697 = vperm.xlu0 %696, %v139
    %v698 = vpop.permute.xlu0 %697
    %701 = vset.pattern.permute.xlu0 0
    %702 = vperm.xlu0 %701, %v140
    %v703 = vpop.permute.xlu0 %702
    %706 = vset.pattern.permute.xlu0 0
    %707 = vperm.xlu0 %706, %v141
    %v708 = vpop.permute.xlu0 %707
    %711 = vset.pattern.permute.xlu0 0
    %712 = vperm.xlu0 %711, %v142
    %v713 = vpop.permute.xlu0 %712
    %716 = vset.pattern.permute.xlu0 0
    %717 = vperm.xlu0 %716, %v143
    %v718 = vpop.permute.xlu0 %717
    %721 = vset.pattern.permute.xlu0 0
    %722 = vperm.xlu0 %721, %v144
    %v723 = vpop.permute.xlu0 %722
    %726 = vset.pattern.permute.xlu0 0
    %727 = vperm.xlu0 %726, %v145
    %v728 = vpop.permute.xlu0 %727
    %731 = vset.pattern.permute.xlu0 0
    %732 = vperm.xlu0 %731, %v146
    %v733 = vpop.permute.xlu0 %732
    %736 = vset.pattern.permute.xlu0 0
    %737 = vperm.xlu0 %736, %v147
    %v738 = vpop.permute.xlu0 %737
    %741 = vset.pattern.permute.xlu0 0
    %742 = vperm.xlu0 %741, %v148
    %v743 = vpop.permute.xlu0 %742
    %746 = vset.pattern.permute.xlu0 0
    %747 = vperm.xlu0 %746, %v149
    %v748 = vpop.permute.xlu0 %747
    %751 = vset.pattern.permute.xlu0 0
    %752 = vperm.xlu0 %751, %v150
    %v753 = vpop.permute.xlu0 %752
    %756 = vset.pattern.permute.xlu0 0
    %757 = vperm.xlu0 %756, %v151
    %v758 = vpop.permute.xlu0 %757
    %761 = vset.pattern.permute.xlu0 0
    %762 = vperm.xlu0 %761, %v152
    %v763 = vpop.permute.xlu0 %762
    %766 = vset.pattern.permute.xlu0 0
    %767 = vperm.xlu0 %766, %v153
    %v768 = vpop.permute.xlu0 %767
    %771 = vset.pattern.permute.xlu0 0
    %772 = vperm.xlu0 %771, %v154
    %v773 = vpop.permute.xlu0 %772
    %776 = vset.pattern.permute.xlu0 0
    %777 = vperm.xlu0 %776, %v155
    %v778 = vpop.permute.xlu0 %777
    %781 = vset.pattern.permute.xlu0 0
    %782 = vperm.xlu0 %781, %v156
    %v783 = vpop.permute.xlu0 %782
    %786 = vset.pattern.permute.xlu0 0
    %787 = vperm.xlu0 %786, %v157
    %v788 = vpop.permute.xlu0 %787
    %791 = vset.pattern.permute.xlu0 0
    %792 = vperm.xlu0 %791, %v158
    %v793 = vpop.permute.xlu0 %792
    %796 = vset.pattern.permute.xlu0 0
    %797 = vperm.xlu0 %796, %v159
    %v798 = vpop.permute.xlu0 %797
    %v801 = vlaneseq
    %v802 = vshrl.u32 %v801, 7
    %v803 = vsub.s32 0, %v802
    %v804 = vrot.slane %v31, %v803
    %v806 = vmul.f32 %v163, %v804
    %v807 = vmul.f32 %v168, %v804
    %v808 = vmul.f32 %v173, %v804
    %v809 = vmul.f32 %v178, %v804
    %v810 = vmul.f32 %v183, %v804
    %v811 = vmul.f32 %v188, %v804
    %v812 = vmul.f32 %v193, %v804
    %v813 = vmul.f32 %v198, %v804
    %v814 = vmul.f32 %v203, %v804
    %v815 = vmul.f32 %v208, %v804
    %v816 = vmul.f32 %v213, %v804
    %v817 = vmul.f32 %v218, %v804
    %v818 = vmul.f32 %v223, %v804
    %v819 = vmul.f32 %v228, %v804
    %v820 = vmul.f32 %v233, %v804
    %v821 = vmul.f32 %v238, %v804
    %v822 = vmul.f32 %v243, %v804
    %v823 = vmul.f32 %v248, %v804
    %v824 = vmul.f32 %v253, %v804
    %v825 = vmul.f32 %v258, %v804
    %v826 = vmul.f32 %v263, %v804
    %v827 = vmul.f32 %v268, %v804
    %v828 = vmul.f32 %v273, %v804
    %v829 = vmul.f32 %v278, %v804
    %v830 = vmul.f32 %v283, %v804
    %v831 = vmul.f32 %v288, %v804
    %v832 = vmul.f32 %v293, %v804
    %v833 = vmul.f32 %v298, %v804
    %v834 = vmul.f32 %v303, %v804
    %v835 = vmul.f32 %v308, %v804
    %v836 = vmul.f32 %v313, %v804
    %v837 = vmul.f32 %v318, %v804
    %v838 = vmul.f32 %v323, %v804
    %v839 = vmul.f32 %v328, %v804
    %v840 = vmul.f32 %v333, %v804
    %v841 = vmul.f32 %v338, %v804
    %v842 = vmul.f32 %v343, %v804
    %v843 = vmul.f32 %v348, %v804
    %v844 = vmul.f32 %v353, %v804
    %v845 = vmul.f32 %v358, %v804
    %v846 = vmul.f32 %v363, %v804
    %v847 = vmul.f32 %v368, %v804
    %v848 = vmul.f32 %v373, %v804
    %v849 = vmul.f32 %v378, %v804
    %v850 = vmul.f32 %v383, %v804
    %v851 = vmul.f32 %v388, %v804
    %v852 = vmul.f32 %v393, %v804
    %v853 = vmul.f32 %v398, %v804
    %v854 = vmul.f32 %v403, %v804
    %v855 = vmul.f32 %v408, %v804
    %v856 = vmul.f32 %v413, %v804
    %v857 = vmul.f32 %v418, %v804
    %v858 = vmul.f32 %v423, %v804
    %v859 = vmul.f32 %v428, %v804
    %v860 = vmul.f32 %v433, %v804
    %v861 = vmul.f32 %v438, %v804
    %v862 = vmul.f32 %v443, %v804
    %v863 = vmul.f32 %v448, %v804
    %v864 = vmul.f32 %v453, %v804
    %v865 = vmul.f32 %v458, %v804
    %v866 = vmul.f32 %v463, %v804
    %v867 = vmul.f32 %v468, %v804
    %v868 = vmul.f32 %v473, %v804
    %v869 = vmul.f32 %v478, %v804
    %v870 = vmul.f32 %v483, %v804
    %v871 = vmul.f32 %v488, %v804
    %v872 = vmul.f32 %v493, %v804
    %v873 = vmul.f32 %v498, %v804
    %v874 = vmul.f32 %v503, %v804
    %v875 = vmul.f32 %v508, %v804
    %v876 = vmul.f32 %v513, %v804
    %v877 = vmul.f32 %v518, %v804
    %v878 = vmul.f32 %v523, %v804
    %v879 = vmul.f32 %v528, %v804
    %v880 = vmul.f32 %v533, %v804
    %v881 = vmul.f32 %v538, %v804
    %v882 = vmul.f32 %v543, %v804
    %v883 = vmul.f32 %v548, %v804
    %v884 = vmul.f32 %v553, %v804
    %v885 = vmul.f32 %v558, %v804
    %v886 = vmul.f32 %v563, %v804
    %v887 = vmul.f32 %v568, %v804
    %v888 = vmul.f32 %v573, %v804
    %v889 = vmul.f32 %v578, %v804
    %v890 = vmul.f32 %v583, %v804
    %v891 = vmul.f32 %v588, %v804
    %v892 = vmul.f32 %v593, %v804
    %v893 = vmul.f32 %v598, %v804
    %v894 = vmul.f32 %v603, %v804
    %v895 = vmul.f32 %v608, %v804
    %v896 = vmul.f32 %v613, %v804
    %v897 = vmul.f32 %v618, %v804
    %v898 = vmul.f32 %v623, %v804
    %v899 = vmul.f32 %v628, %v804
    %v900 = vmul.f32 %v633, %v804
    %v901 = vmul.f32 %v638, %v804
    %v902 = vmul.f32 %v643, %v804
    %v903 = vmul.f32 %v648, %v804
    %v904 = vmul.f32 %v653, %v804
    %v905 = vmul.f32 %v658, %v804
    %v906 = vmul.f32 %v663, %v804
    %v907 = vmul.f32 %v668, %v804
    %v908 = vmul.f32 %v673, %v804
    %v909 = vmul.f32 %v678, %v804
    %v910 = vmul.f32 %v683, %v804
    %v911 = vmul.f32 %v688, %v804
    %v912 = vmul.f32 %v693, %v804
    %v913 = vmul.f32 %v698, %v804
    %v914 = vmul.f32 %v703, %v804
    %v915 = vmul.f32 %v708, %v804
    %v916 = vmul.f32 %v713, %v804
    %v917 = vmul.f32 %v718, %v804
    %v918 = vmul.f32 %v723, %v804
    %v919 = vmul.f32 %v728, %v804
    %v920 = vmul.f32 %v733, %v804
    %v921 = vmul.f32 %v738, %v804
    %v922 = vmul.f32 %v743, %v804
    %v923 = vmul.f32 %v748, %v804
    %v924 = vmul.f32 %v753, %v804
    %v925 = vmul.f32 %v758, %v804
    %v926 = vmul.f32 %v763, %v804
    %v927 = vmul.f32 %v768, %v804
    %v928 = vmul.f32 %v773, %v804
    %v929 = vmul.f32 %v778, %v804
    %v930 = vmul.f32 %v783, %v804
    %v931 = vmul.f32 %v788, %v804
    %v932 = vmul.f32 %v793, %v804
    %v933 = vmul.f32 %v798, %v804
    %934 = vset.pattern.permute.xlu0 1
    %935 = vperm.xlu0 %934, %v32
    %v936 = vpop.permute.xlu0 %935
    %938 = vset.pattern.permute.xlu0 1
    %939 = vperm.xlu0 %938, %v33
    %v940 = vpop.permute.xlu0 %939
    %942 = vset.pattern.permute.xlu0 1
    %943 = vperm.xlu0 %942, %v34
    %v944 = vpop.permute.xlu0 %943
    %946 = vset.pattern.permute.xlu0 1
    %947 = vperm.xlu0 %946, %v35
    %v948 = vpop.permute.xlu0 %947
    %950 = vset.pattern.permute.xlu0 1
    %951 = vperm.xlu0 %950, %v36
    %v952 = vpop.permute.xlu0 %951
    %954 = vset.pattern.permute.xlu0 1
    %955 = vperm.xlu0 %954, %v37
    %v956 = vpop.permute.xlu0 %955
    %958 = vset.pattern.permute.xlu0 1
    %959 = vperm.xlu0 %958, %v38
    %v960 = vpop.permute.xlu0 %959
    %962 = vset.pattern.permute.xlu0 1
    %963 = vperm.xlu0 %962, %v39
    %v964 = vpop.permute.xlu0 %963
    %966 = vset.pattern.permute.xlu0 1
    %967 = vperm.xlu0 %966, %v40
    %v968 = vpop.permute.xlu0 %967
    %970 = vset.pattern.permute.xlu0 1
    %971 = vperm.xlu0 %970, %v41
    %v972 = vpop.permute.xlu0 %971
    %974 = vset.pattern.permute.xlu0 1
    %975 = vperm.xlu0 %974, %v42
    %v976 = vpop.permute.xlu0 %975
    %978 = vset.pattern.permute.xlu0 1
    %979 = vperm.xlu0 %978, %v43
    %v980 = vpop.permute.xlu0 %979
    %982 = vset.pattern.permute.xlu0 1
    %983 = vperm.xlu0 %982, %v44
    %v984 = vpop.permute.xlu0 %983
    %986 = vset.pattern.permute.xlu0 1
    %987 = vperm.xlu0 %986, %v45
    %v988 = vpop.permute.xlu0 %987
    %990 = vset.pattern.permute.xlu0 1
    %991 = vperm.xlu0 %990, %v46
    %v992 = vpop.permute.xlu0 %991
    %994 = vset.pattern.permute.xlu0 1
    %995 = vperm.xlu0 %994, %v47
    %v996 = vpop.permute.xlu0 %995
    %998 = vset.pattern.permute.xlu0 1
    %999 = vperm.xlu0 %998, %v48
    %v1000 = vpop.permute.xlu0 %999
    %1002 = vset.pattern.permute.xlu0 1
    %1003 = vperm.xlu0 %1002, %v49
    %v1004 = vpop.permute.xlu0 %1003
    %1006 = vset.pattern.permute.xlu0 1
    %1007 = vperm.xlu0 %1006, %v50
    %v1008 = vpop.permute.xlu0 %1007
    %1010 = vset.pattern.permute.xlu0 1
    %1011 = vperm.xlu0 %1010, %v51
    %v1012 = vpop.permute.xlu0 %1011
    %1014 = vset.pattern.permute.xlu0 1
    %1015 = vperm.xlu0 %1014, %v52
    %v1016 = vpop.permute.xlu0 %1015
    %1018 = vset.pattern.permute.xlu0 1
    %1019 = vperm.xlu0 %1018, %v53
    %v1020 = vpop.permute.xlu0 %1019
    %1022 = vset.pattern.permute.xlu0 1
    %1023 = vperm.xlu0 %1022, %v54
    %v1024 = vpop.permute.xlu0 %1023
    %1026 = vset.pattern.permute.xlu0 1
    %1027 = vperm.xlu0 %1026, %v55
    %v1028 = vpop.permute.xlu0 %1027
    %1030 = vset.pattern.permute.xlu0 1
    %1031 = vperm.xlu0 %1030, %v56
    %v1032 = vpop.permute.xlu0 %1031
    %1034 = vset.pattern.permute.xlu0 1
    %1035 = vperm.xlu0 %1034, %v57
    %v1036 = vpop.permute.xlu0 %1035
    %1038 = vset.pattern.permute.xlu0 1
    %1039 = vperm.xlu0 %1038, %v58
    %v1040 = vpop.permute.xlu0 %1039
    %1042 = vset.pattern.permute.xlu0 1
    %1043 = vperm.xlu0 %1042, %v59
    %v1044 = vpop.permute.xlu0 %1043
    %1046 = vset.pattern.permute.xlu0 1
    %1047 = vperm.xlu0 %1046, %v60
    %v1048 = vpop.permute.xlu0 %1047
    %1050 = vset.pattern.permute.xlu0 1
    %1051 = vperm.xlu0 %1050, %v61
    %v1052 = vpop.permute.xlu0 %1051
    %1054 = vset.pattern.permute.xlu0 1
    %1055 = vperm.xlu0 %1054, %v62
    %v1056 = vpop.permute.xlu0 %1055
    %1058 = vset.pattern.permute.xlu0 1
    %1059 = vperm.xlu0 %1058, %v63
    %v1060 = vpop.permute.xlu0 %1059
    %1062 = vset.pattern.permute.xlu0 1
    %1063 = vperm.xlu0 %1062, %v64
    %v1064 = vpop.permute.xlu0 %1063
    %1066 = vset.pattern.permute.xlu0 1
    %1067 = vperm.xlu0 %1066, %v65
    %v1068 = vpop.permute.xlu0 %1067
    %1070 = vset.pattern.permute.xlu0 1
    %1071 = vperm.xlu0 %1070, %v66
    %v1072 = vpop.permute.xlu0 %1071
    %1074 = vset.pattern.permute.xlu0 1
    %1075 = vperm.xlu0 %1074, %v67
    %v1076 = vpop.permute.xlu0 %1075
    %1078 = vset.pattern.permute.xlu0 1
    %1079 = vperm.xlu0 %1078, %v68
    %v1080 = vpop.permute.xlu0 %1079
    %1082 = vset.pattern.permute.xlu0 1
    %1083 = vperm.xlu0 %1082, %v69
    %v1084 = vpop.permute.xlu0 %1083
    %1086 = vset.pattern.permute.xlu0 1
    %1087 = vperm.xlu0 %1086, %v70
    %v1088 = vpop.permute.xlu0 %1087
    %1090 = vset.pattern.permute.xlu0 1
    %1091 = vperm.xlu0 %1090, %v71
    %v1092 = vpop.permute.xlu0 %1091
    %1094 = vset.pattern.permute.xlu0 1
    %1095 = vperm.xlu0 %1094, %v72
    %v1096 = vpop.permute.xlu0 %1095
    %1098 = vset.pattern.permute.xlu0 1
    %1099 = vperm.xlu0 %1098, %v73
    %v1100 = vpop.permute.xlu0 %1099
    %1102 = vset.pattern.permute.xlu0 1
    %1103 = vperm.xlu0 %1102, %v74
    %v1104 = vpop.permute.xlu0 %1103
    %1106 = vset.pattern.permute.xlu0 1
    %1107 = vperm.xlu0 %1106, %v75
    %v1108 = vpop.permute.xlu0 %1107
    %1110 = vset.pattern.permute.xlu0 1
    %1111 = vperm.xlu0 %1110, %v76
    %v1112 = vpop.permute.xlu0 %1111
    %1114 = vset.pattern.permute.xlu0 1
    %1115 = vperm.xlu0 %1114, %v77
    %v1116 = vpop.permute.xlu0 %1115
    %1118 = vset.pattern.permute.xlu0 1
    %1119 = vperm.xlu0 %1118, %v78
    %v1120 = vpop.permute.xlu0 %1119
    %1122 = vset.pattern.permute.xlu0 1
    %1123 = vperm.xlu0 %1122, %v79
    %v1124 = vpop.permute.xlu0 %1123
    %1126 = vset.pattern.permute.xlu0 1
    %1127 = vperm.xlu0 %1126, %v80
    %v1128 = vpop.permute.xlu0 %1127
    %1130 = vset.pattern.permute.xlu0 1
    %1131 = vperm.xlu0 %1130, %v81
    %v1132 = vpop.permute.xlu0 %1131
    %1134 = vset.pattern.permute.xlu0 1
    %1135 = vperm.xlu0 %1134, %v82
    %v1136 = vpop.permute.xlu0 %1135
    %1138 = vset.pattern.permute.xlu0 1
    %1139 = vperm.xlu0 %1138, %v83
    %v1140 = vpop.permute.xlu0 %1139
    %1142 = vset.pattern.permute.xlu0 1
    %1143 = vperm.xlu0 %1142, %v84
    %v1144 = vpop.permute.xlu0 %1143
    %1146 = vset.pattern.permute.xlu0 1
    %1147 = vperm.xlu0 %1146, %v85
    %v1148 = vpop.permute.xlu0 %1147
    %1150 = vset.pattern.permute.xlu0 1
    %1151 = vperm.xlu0 %1150, %v86
    %v1152 = vpop.permute.xlu0 %1151
    %1154 = vset.pattern.permute.xlu0 1
    %1155 = vperm.xlu0 %1154, %v87
    %v1156 = vpop.permute.xlu0 %1155
    %1158 = vset.pattern.permute.xlu0 1
    %1159 = vperm.xlu0 %1158, %v88
    %v1160 = vpop.permute.xlu0 %1159
    %1162 = vset.pattern.permute.xlu0 1
    %1163 = vperm.xlu0 %1162, %v89
    %v1164 = vpop.permute.xlu0 %1163
    %1166 = vset.pattern.permute.xlu0 1
    %1167 = vperm.xlu0 %1166, %v90
    %v1168 = vpop.permute.xlu0 %1167
    %1170 = vset.pattern.permute.xlu0 1
    %1171 = vperm.xlu0 %1170, %v91
    %v1172 = vpop.permute.xlu0 %1171
    %1174 = vset.pattern.permute.xlu0 1
    %1175 = vperm.xlu0 %1174, %v92
    %v1176 = vpop.permute.xlu0 %1175
    %1178 = vset.pattern.permute.xlu0 1
    %1179 = vperm.xlu0 %1178, %v93
    %v1180 = vpop.permute.xlu0 %1179
    %1182 = vset.pattern.permute.xlu0 1
    %1183 = vperm.xlu0 %1182, %v94
    %v1184 = vpop.permute.xlu0 %1183
    %1186 = vset.pattern.permute.xlu0 1
    %1187 = vperm.xlu0 %1186, %v95
    %v1188 = vpop.permute.xlu0 %1187
    %1190 = vset.pattern.permute.xlu0 1
    %1191 = vperm.xlu0 %1190, %v96
    %v1192 = vpop.permute.xlu0 %1191
    %1194 = vset.pattern.permute.xlu0 1
    %1195 = vperm.xlu0 %1194, %v97
    %v1196 = vpop.permute.xlu0 %1195
    %1198 = vset.pattern.permute.xlu0 1
    %1199 = vperm.xlu0 %1198, %v98
    %v1200 = vpop.permute.xlu0 %1199
    %1202 = vset.pattern.permute.xlu0 1
    %1203 = vperm.xlu0 %1202, %v99
    %v1204 = vpop.permute.xlu0 %1203
    %1206 = vset.pattern.permute.xlu0 1
    %1207 = vperm.xlu0 %1206, %v100
    %v1208 = vpop.permute.xlu0 %1207
    %1210 = vset.pattern.permute.xlu0 1
    %1211 = vperm.xlu0 %1210, %v101
    %v1212 = vpop.permute.xlu0 %1211
    %1214 = vset.pattern.permute.xlu0 1
    %1215 = vperm.xlu0 %1214, %v102
    %v1216 = vpop.permute.xlu0 %1215
    %1218 = vset.pattern.permute.xlu0 1
    %1219 = vperm.xlu0 %1218, %v103
    %v1220 = vpop.permute.xlu0 %1219
    %1222 = vset.pattern.permute.xlu0 1
    %1223 = vperm.xlu0 %1222, %v104
    %v1224 = vpop.permute.xlu0 %1223
    %1226 = vset.pattern.permute.xlu0 1
    %1227 = vperm.xlu0 %1226, %v105
    %v1228 = vpop.permute.xlu0 %1227
    %1230 = vset.pattern.permute.xlu0 1
    %1231 = vperm.xlu0 %1230, %v106
    %v1232 = vpop.permute.xlu0 %1231
    %1234 = vset.pattern.permute.xlu0 1
    %1235 = vperm.xlu0 %1234, %v107
    %v1236 = vpop.permute.xlu0 %1235
    %1238 = vset.pattern.permute.xlu0 1
    %1239 = vperm.xlu0 %1238, %v108
    %v1240 = vpop.permute.xlu0 %1239
    %1242 = vset.pattern.permute.xlu0 1
    %1243 = vperm.xlu0 %1242, %v109
    %v1244 = vpop.permute.xlu0 %1243
    %1246 = vset.pattern.permute.xlu0 1
    %1247 = vperm.xlu0 %1246, %v110
    %v1248 = vpop.permute.xlu0 %1247
    %1250 = vset.pattern.permute.xlu0 1
    %1251 = vperm.xlu0 %1250, %v111
    %v1252 = vpop.permute.xlu0 %1251
    %1254 = vset.pattern.permute.xlu0 1
    %1255 = vperm.xlu0 %1254, %v112
    %v1256 = vpop.permute.xlu0 %1255
    %1258 = vset.pattern.permute.xlu0 1
    %1259 = vperm.xlu0 %1258, %v113
    %v1260 = vpop.permute.xlu0 %1259
    %1262 = vset.pattern.permute.xlu0 1
    %1263 = vperm.xlu0 %1262, %v114
    %v1264 = vpop.permute.xlu0 %1263
    %1266 = vset.pattern.permute.xlu0 1
    %1267 = vperm.xlu0 %1266, %v115
    %v1268 = vpop.permute.xlu0 %1267
    %1270 = vset.pattern.permute.xlu0 1
    %1271 = vperm.xlu0 %1270, %v116
    %v1272 = vpop.permute.xlu0 %1271
    %1274 = vset.pattern.permute.xlu0 1
    %1275 = vperm.xlu0 %1274, %v117
    %v1276 = vpop.permute.xlu0 %1275
    %1278 = vset.pattern.permute.xlu0 1
    %1279 = vperm.xlu0 %1278, %v118
    %v1280 = vpop.permute.xlu0 %1279
    %1282 = vset.pattern.permute.xlu0 1
    %1283 = vperm.xlu0 %1282, %v119
    %v1284 = vpop.permute.xlu0 %1283
    %1286 = vset.pattern.permute.xlu0 1
    %1287 = vperm.xlu0 %1286, %v120
    %v1288 = vpop.permute.xlu0 %1287
    %1290 = vset.pattern.permute.xlu0 1
    %1291 = vperm.xlu0 %1290, %v121
    %v1292 = vpop.permute.xlu0 %1291
    %1294 = vset.pattern.permute.xlu0 1
    %1295 = vperm.xlu0 %1294, %v122
    %v1296 = vpop.permute.xlu0 %1295
    %1298 = vset.pattern.permute.xlu0 1
    %1299 = vperm.xlu0 %1298, %v123
    %v1300 = vpop.permute.xlu0 %1299
    %1302 = vset.pattern.permute.xlu0 1
    %1303 = vperm.xlu0 %1302, %v124
    %v1304 = vpop.permute.xlu0 %1303
    %1306 = vset.pattern.permute.xlu0 1
    %1307 = vperm.xlu0 %1306, %v125
    %v1308 = vpop.permute.xlu0 %1307
    %1310 = vset.pattern.permute.xlu0 1
    %1311 = vperm.xlu0 %1310, %v126
    %v1312 = vpop.permute.xlu0 %1311
    %1314 = vset.pattern.permute.xlu0 1
    %1315 = vperm.xlu0 %1314, %v127
    %v1316 = vpop.permute.xlu0 %1315
    %1318 = vset.pattern.permute.xlu0 1
    %1319 = vperm.xlu0 %1318, %v128
    %v1320 = vpop.permute.xlu0 %1319
    %1322 = vset.pattern.permute.xlu0 1
    %1323 = vperm.xlu0 %1322, %v129
    %v1324 = vpop.permute.xlu0 %1323
    %1326 = vset.pattern.permute.xlu0 1
    %1327 = vperm.xlu0 %1326, %v130
    %v1328 = vpop.permute.xlu0 %1327
    %1330 = vset.pattern.permute.xlu0 1
    %1331 = vperm.xlu0 %1330, %v131
    %v1332 = vpop.permute.xlu0 %1331
    %1334 = vset.pattern.permute.xlu0 1
    %1335 = vperm.xlu0 %1334, %v132
    %v1336 = vpop.permute.xlu0 %1335
    %1338 = vset.pattern.permute.xlu0 1
    %1339 = vperm.xlu0 %1338, %v133
    %v1340 = vpop.permute.xlu0 %1339
    %1342 = vset.pattern.permute.xlu0 1
    %1343 = vperm.xlu0 %1342, %v134
    %v1344 = vpop.permute.xlu0 %1343
    %1346 = vset.pattern.permute.xlu0 1
    %1347 = vperm.xlu0 %1346, %v135
    %v1348 = vpop.permute.xlu0 %1347
    %1350 = vset.pattern.permute.xlu0 1
    %1351 = vperm.xlu0 %1350, %v136
    %v1352 = vpop.permute.xlu0 %1351
    %1354 = vset.pattern.permute.xlu0 1
    %1355 = vperm.xlu0 %1354, %v137
    %v1356 = vpop.permute.xlu0 %1355
    %1358 = vset.pattern.permute.xlu0 1
    %1359 = vperm.xlu0 %1358, %v138
    %v1360 = vpop.permute.xlu0 %1359
    %1362 = vset.pattern.permute.xlu0 1
    %1363 = vperm.xlu0 %1362, %v139
    %v1364 = vpop.permute.xlu0 %1363
    %1366 = vset.pattern.permute.xlu0 1
    %1367 = vperm.xlu0 %1366, %v140
    %v1368 = vpop.permute.xlu0 %1367
    %1370 = vset.pattern.permute.xlu0 1
    %1371 = vperm.xlu0 %1370, %v141
    %v1372 = vpop.permute.xlu0 %1371
    %1374 = vset.pattern.permute.xlu0 1
    %1375 = vperm.xlu0 %1374, %v142
    %v1376 = vpop.permute.xlu0 %1375
    %1378 = vset.pattern.permute.xlu0 1
    %1379 = vperm.xlu0 %1378, %v143
    %v1380 = vpop.permute.xlu0 %1379
    %1382 = vset.pattern.permute.xlu0 1
    %1383 = vperm.xlu0 %1382, %v144
    %v1384 = vpop.permute.xlu0 %1383
    %1386 = vset.pattern.permute.xlu0 1
    %1387 = vperm.xlu0 %1386, %v145
    %v1388 = vpop.permute.xlu0 %1387
    %1390 = vset.pattern.permute.xlu0 1
    %1391 = vperm.xlu0 %1390, %v146
    %v1392 = vpop.permute.xlu0 %1391
    %1394 = vset.pattern.permute.xlu0 1
    %1395 = vperm.xlu0 %1394, %v147
    %v1396 = vpop.permute.xlu0 %1395
    %1398 = vset.pattern.permute.xlu0 1
    %1399 = vperm.xlu0 %1398, %v148
    %v1400 = vpop.permute.xlu0 %1399
    %1402 = vset.pattern.permute.xlu0 1
    %1403 = vperm.xlu0 %1402, %v149
    %v1404 = vpop.permute.xlu0 %1403
    %1406 = vset.pattern.permute.xlu0 1
    %1407 = vperm.xlu0 %1406, %v150
    %v1408 = vpop.permute.xlu0 %1407
    %1410 = vset.pattern.permute.xlu0 1
    %1411 = vperm.xlu0 %1410, %v151
    %v1412 = vpop.permute.xlu0 %1411
    %1414 = vset.pattern.permute.xlu0 1
    %1415 = vperm.xlu0 %1414, %v152
    %v1416 = vpop.permute.xlu0 %1415
    %1418 = vset.pattern.permute.xlu0 1
    %1419 = vperm.xlu0 %1418, %v153
    %v1420 = vpop.permute.xlu0 %1419
    %1422 = vset.pattern.permute.xlu0 1
    %1423 = vperm.xlu0 %1422, %v154
    %v1424 = vpop.permute.xlu0 %1423
    %1426 = vset.pattern.permute.xlu0 1
    %1427 = vperm.xlu0 %1426, %v155
    %v1428 = vpop.permute.xlu0 %1427
    %1430 = vset.pattern.permute.xlu0 1
    %1431 = vperm.xlu0 %1430, %v156
    %v1432 = vpop.permute.xlu0 %1431
    %1434 = vset.pattern.permute.xlu0 1
    %1435 = vperm.xlu0 %1434, %v157
    %v1436 = vpop.permute.xlu0 %1435
    %1438 = vset.pattern.permute.xlu0 1
    %1439 = vperm.xlu0 %1438, %v158
    %v1440 = vpop.permute.xlu0 %1439
    %1442 = vset.pattern.permute.xlu0 1
    %1443 = vperm.xlu0 %1442, %v159
    %v1444 = vpop.permute.xlu0 %1443
    %v1446 = vadd.f32 %v806, %v936
    %v1447 = vadd.f32 %v807, %v940
    %v1448 = vadd.f32 %v808, %v944
    %v1449 = vadd.f32 %v809, %v948
    %v1450 = vadd.f32 %v810, %v952
    %v1451 = vadd.f32 %v811, %v956
    %v1452 = vadd.f32 %v812, %v960
    %v1453 = vadd.f32 %v813, %v964
    %v1454 = vadd.f32 %v814, %v968
    %v1455 = vadd.f32 %v815, %v972
    %v1456 = vadd.f32 %v816, %v976
    %v1457 = vadd.f32 %v817, %v980
    %v1458 = vadd.f32 %v818, %v984
    %v1459 = vadd.f32 %v819, %v988
    %v1460 = vadd.f32 %v820, %v992
    %v1461 = vadd.f32 %v821, %v996
    %v1462 = vadd.f32 %v822, %v1000
    %v1463 = vadd.f32 %v823, %v1004
    %v1464 = vadd.f32 %v824, %v1008
    %v1465 = vadd.f32 %v825, %v1012
    %v1466 = vadd.f32 %v826, %v1016
    %v1467 = vadd.f32 %v827, %v1020
    %v1468 = vadd.f32 %v828, %v1024
    %v1469 = vadd.f32 %v829, %v1028
    %v1470 = vadd.f32 %v830, %v1032
    %v1471 = vadd.f32 %v831, %v1036
    %v1472 = vadd.f32 %v832, %v1040
    %v1473 = vadd.f32 %v833, %v1044
    %v1474 = vadd.f32 %v834, %v1048
    %v1475 = vadd.f32 %v835, %v1052
    %v1476 = vadd.f32 %v836, %v1056
    %v1477 = vadd.f32 %v837, %v1060
    %v1478 = vadd.f32 %v838, %v1064
    %v1479 = vadd.f32 %v839, %v1068
    %v1480 = vadd.f32 %v840, %v1072
    %v1481 = vadd.f32 %v841, %v1076
    %v1482 = vadd.f32 %v842, %v1080
    %v1483 = vadd.f32 %v843, %v1084
    %v1484 = vadd.f32 %v844, %v1088
    %v1485 = vadd.f32 %v845, %v1092
    %v1486 = vadd.f32 %v846, %v1096
    %v1487 = vadd.f32 %v847, %v1100
    %v1488 = vadd.f32 %v848, %v1104
    %v1489 = vadd.f32 %v849, %v1108
    %v1490 = vadd.f32 %v850, %v1112
    %v1491 = vadd.f32 %v851, %v1116
    %v1492 = vadd.f32 %v852, %v1120
    %v1493 = vadd.f32 %v853, %v1124
    %v1494 = vadd.f32 %v854, %v1128
    %v1495 = vadd.f32 %v855, %v1132
    %v1496 = vadd.f32 %v856, %v1136
    %v1497 = vadd.f32 %v857, %v1140
    %v1498 = vadd.f32 %v858, %v1144
    %v1499 = vadd.f32 %v859, %v1148
    %v1500 = vadd.f32 %v860, %v1152
    %v1501 = vadd.f32 %v861, %v1156
    %v1502 = vadd.f32 %v862, %v1160
    %v1503 = vadd.f32 %v863, %v1164
    %v1504 = vadd.f32 %v864, %v1168
    %v1505 = vadd.f32 %v865, %v1172
    %v1506 = vadd.f32 %v866, %v1176
    %v1507 = vadd.f32 %v867, %v1180
    %v1508 = vadd.f32 %v868, %v1184
    %v1509 = vadd.f32 %v869, %v1188
    %v1510 = vadd.f32 %v870, %v1192
    %v1511 = vadd.f32 %v871, %v1196
    %v1512 = vadd.f32 %v872, %v1200
    %v1513 = vadd.f32 %v873, %v1204
    %v1514 = vadd.f32 %v874, %v1208
    %v1515 = vadd.f32 %v875, %v1212
    %v1516 = vadd.f32 %v876, %v1216
    %v1517 = vadd.f32 %v877, %v1220
    %v1518 = vadd.f32 %v878, %v1224
    %v1519 = vadd.f32 %v879, %v1228
    %v1520 = vadd.f32 %v880, %v1232
    %v1521 = vadd.f32 %v881, %v1236
    %v1522 = vadd.f32 %v882, %v1240
    %v1523 = vadd.f32 %v883, %v1244
    %v1524 = vadd.f32 %v884, %v1248
    %v1525 = vadd.f32 %v885, %v1252
    %v1526 = vadd.f32 %v886, %v1256
    %v1527 = vadd.f32 %v887, %v1260
    %v1528 = vadd.f32 %v888, %v1264
    %v1529 = vadd.f32 %v889, %v1268
    %v1530 = vadd.f32 %v890, %v1272
    %v1531 = vadd.f32 %v891, %v1276
    %v1532 = vadd.f32 %v892, %v1280
    %v1533 = vadd.f32 %v893, %v1284
    %v1534 = vadd.f32 %v894, %v1288
    %v1535 = vadd.f32 %v895, %v1292
    %v1536 = vadd.f32 %v896, %v1296
    %v1537 = vadd.f32 %v897, %v1300
    %v1538 = vadd.f32 %v898, %v1304
    %v1539 = vadd.f32 %v899, %v1308
    %v1540 = vadd.f32 %v900, %v1312
    %v1541 = vadd.f32 %v901, %v1316
    %v1542 = vadd.f32 %v902, %v1320
    %v1543 = vadd.f32 %v903, %v1324
    %v1544 = vadd.f32 %v904, %v1328
    %v1545 = vadd.f32 %v905, %v1332
    %v1546 = vadd.f32 %v906, %v1336
    %v1547 = vadd.f32 %v907, %v1340
    %v1548 = vadd.f32 %v908, %v1344
    %v1549 = vadd.f32 %v909, %v1348
    %v1550 = vadd.f32 %v910, %v1352
    %v1551 = vadd.f32 %v911, %v1356
    %v1552 = vadd.f32 %v912, %v1360
    %v1553 = vadd.f32 %v913, %v1364
    %v1554 = vadd.f32 %v914, %v1368
    %v1555 = vadd.f32 %v915, %v1372
    %v1556 = vadd.f32 %v916, %v1376
    %v1557 = vadd.f32 %v917, %v1380
    %v1558 = vadd.f32 %v918, %v1384
    %v1559 = vadd.f32 %v919, %v1388
    %v1560 = vadd.f32 %v920, %v1392
    %v1561 = vadd.f32 %v921, %v1396
    %v1562 = vadd.f32 %v922, %v1400
    %v1563 = vadd.f32 %v923, %v1404
    %v1564 = vadd.f32 %v924, %v1408
    %v1565 = vadd.f32 %v925, %v1412
    %v1566 = vadd.f32 %v926, %v1416
    %v1567 = vadd.f32 %v927, %v1420
    %v1568 = vadd.f32 %v928, %v1424
    %v1569 = vadd.f32 %v929, %v1428
    %v1570 = vadd.f32 %v930, %v1432
    %v1571 = vadd.f32 %v931, %v1436
    %v1572 = vadd.f32 %v932, %v1440
    %v1573 = vadd.f32 %v933, %v1444
    %v1574 = vtanh.pop %v1446
    %v1575 = vtanh.pop %v1447
    %v1576 = vtanh.pop %v1448
    %v1577 = vtanh.pop %v1449
    %v1578 = vtanh.pop %v1450
    %v1579 = vtanh.pop %v1451
    %v1580 = vtanh.pop %v1452
    %v1581 = vtanh.pop %v1453
    %v1582 = vtanh.pop %v1454
    %v1583 = vtanh.pop %v1455
    %v1584 = vtanh.pop %v1456
    %v1585 = vtanh.pop %v1457
    %v1586 = vtanh.pop %v1458
    %v1587 = vtanh.pop %v1459
    %v1588 = vtanh.pop %v1460
    %v1589 = vtanh.pop %v1461
    %v1590 = vtanh.pop %v1462
    %v1591 = vtanh.pop %v1463
    %v1592 = vtanh.pop %v1464
    %v1593 = vtanh.pop %v1465
    %v1594 = vtanh.pop %v1466
    %v1595 = vtanh.pop %v1467
    %v1596 = vtanh.pop %v1468
    %v1597 = vtanh.pop %v1469
    %v1598 = vtanh.pop %v1470
    %v1599 = vtanh.pop %v1471
    %v1600 = vtanh.pop %v1472
    %v1601 = vtanh.pop %v1473
    %v1602 = vtanh.pop %v1474
    %v1603 = vtanh.pop %v1475
    %v1604 = vtanh.pop %v1476
    %v1605 = vtanh.pop %v1477
    %v1606 = vtanh.pop %v1478
    %v1607 = vtanh.pop %v1479
    %v1608 = vtanh.pop %v1480
    %v1609 = vtanh.pop %v1481
    %v1610 = vtanh.pop %v1482
    %v1611 = vtanh.pop %v1483
    %v1612 = vtanh.pop %v1484
    %v1613 = vtanh.pop %v1485
    %v1614 = vtanh.pop %v1486
    %v1615 = vtanh.pop %v1487
    %v1616 = vtanh.pop %v1488
    %v1617 = vtanh.pop %v1489
    %v1618 = vtanh.pop %v1490
    %v1619 = vtanh.pop %v1491
    %v1620 = vtanh.pop %v1492
    %v1621 = vtanh.pop %v1493
    %v1622 = vtanh.pop %v1494
    %v1623 = vtanh.pop %v1495
    %v1624 = vtanh.pop %v1496
    %v1625 = vtanh.pop %v1497
    %v1626 = vtanh.pop %v1498
    %v1627 = vtanh.pop %v1499
    %v1628 = vtanh.pop %v1500
    %v1629 = vtanh.pop %v1501
    %v1630 = vtanh.pop %v1502
    %v1631 = vtanh.pop %v1503
    %v1632 = vtanh.pop %v1504
    %v1633 = vtanh.pop %v1505
    %v1634 = vtanh.pop %v1506
    %v1635 = vtanh.pop %v1507
    %v1636 = vtanh.pop %v1508
    %v1637 = vtanh.pop %v1509
    %v1638 = vtanh.pop %v1510
    %v1639 = vtanh.pop %v1511
    %v1640 = vtanh.pop %v1512
    %v1641 = vtanh.pop %v1513
    %v1642 = vtanh.pop %v1514
    %v1643 = vtanh.pop %v1515
    %v1644 = vtanh.pop %v1516
    %v1645 = vtanh.pop %v1517
    %v1646 = vtanh.pop %v1518
    %v1647 = vtanh.pop %v1519
    %v1648 = vtanh.pop %v1520
    %v1649 = vtanh.pop %v1521
    %v1650 = vtanh.pop %v1522
    %v1651 = vtanh.pop %v1523
    %v1652 = vtanh.pop %v1524
    %v1653 = vtanh.pop %v1525
    %v1654 = vtanh.pop %v1526
    %v1655 = vtanh.pop %v1527
    %v1656 = vtanh.pop %v1528
    %v1657 = vtanh.pop %v1529
    %v1658 = vtanh.pop %v1530
    %v1659 = vtanh.pop %v1531
    %v1660 = vtanh.pop %v1532
    %v1661 = vtanh.pop %v1533
    %v1662 = vtanh.pop %v1534
    %v1663 = vtanh.pop %v1535
    %v1664 = vtanh.pop %v1536
    %v1665 = vtanh.pop %v1537
    %v1666 = vtanh.pop %v1538
    %v1667 = vtanh.pop %v1539
    %v1668 = vtanh.pop %v1540
    %v1669 = vtanh.pop %v1541
    %v1670 = vtanh.pop %v1542
    %v1671 = vtanh.pop %v1543
    %v1672 = vtanh.pop %v1544
    %v1673 = vtanh.pop %v1545
    %v1674 = vtanh.pop %v1546
    %v1675 = vtanh.pop %v1547
    %v1676 = vtanh.pop %v1548
    %v1677 = vtanh.pop %v1549
    %v1678 = vtanh.pop %v1550
    %v1679 = vtanh.pop %v1551
    %v1680 = vtanh.pop %v1552
    %v1681 = vtanh.pop %v1553
    %v1682 = vtanh.pop %v1554
    %v1683 = vtanh.pop %v1555
    %v1684 = vtanh.pop %v1556
    %v1685 = vtanh.pop %v1557
    %v1686 = vtanh.pop %v1558
    %v1687 = vtanh.pop %v1559
    %v1688 = vtanh.pop %v1560
    %v1689 = vtanh.pop %v1561
    %v1690 = vtanh.pop %v1562
    %v1691 = vtanh.pop %v1563
    %v1692 = vtanh.pop %v1564
    %v1693 = vtanh.pop %v1565
    %v1694 = vtanh.pop %v1566
    %v1695 = vtanh.pop %v1567
    %v1696 = vtanh.pop %v1568
    %v1697 = vtanh.pop %v1569
    %v1698 = vtanh.pop %v1570
    %v1699 = vtanh.pop %v1571
    %v1700 = vtanh.pop %v1572
    %v1701 = vtanh.pop %v1573
    %v1702 = vld [vmem:[%s2] sm:$0xff]
    %v1703 = vld [vmem:[%s2 + $0x8] sm:$0xff]
    %v1704 = vld [vmem:[%s2 + $0x10] sm:$0xff]
    %v1705 = vld [vmem:[%s2 + $0x18] sm:$0xff]
    %v1706 = vld [vmem:[%s2 + $0x20] sm:$0xff]
    %v1707 = vld [vmem:[%s2 + $0x28] sm:$0xff]
    %v1708 = vld [vmem:[%s2 + $0x30] sm:$0xff]
    %v1709 = vld [vmem:[%s2 + $0x38] sm:$0xff]
    %1710 = vmatprep.subr.mxu0 0.0
    %1711 = vmatpush1.msra.mxu0 %v1574
    %1712 = vmatprep.subr.mxu0 0.0
    %1713 = vmatpush1.msra.mxu0 %v1575
    %1714 = vmatprep.subr.mxu0 0.0
    %1715 = vmatpush1.msra.mxu0 %v1576
    %1716 = vmatprep.subr.mxu0 0.0
    %1717 = vmatpush1.msra.mxu0 %v1577
    %1718 = vmatprep.subr.mxu0 0.0
    %1719 = vmatpush1.msra.mxu0 %v1578
    %1720 = vmatprep.subr.mxu0 0.0
    %1721 = vmatpush1.msra.mxu0 %v1579
    %1722 = vmatprep.subr.mxu0 0.0
    %1723 = vmatpush1.msra.mxu0 %v1580
    %1724 = vmatprep.subr.mxu0 0.0
    %1725 = vmatpush1.msra.mxu0 %v1581
    %1726 = vmatprep.subr.mxu0 0.0
    %1727 = vmatpush1.msra.mxu0 %v1582
    %1728 = vmatprep.subr.mxu0 0.0
    %1729 = vmatpush1.msra.mxu0 %v1583
    %1730 = vmatprep.subr.mxu0 0.0
    %1731 = vmatpush1.msra.mxu0 %v1584
    %1732 = vmatprep.subr.mxu0 0.0
    %1733 = vmatpush1.msra.mxu0 %v1585
    %1734 = vmatprep.subr.mxu0 0.0
    %1735 = vmatpush1.msra.mxu0 %v1586
    %1736 = vmatprep.subr.mxu0 0.0
    %1737 = vmatpush1.msra.mxu0 %v1587
    %1738 = vmatprep.subr.mxu0 0.0
    %1739 = vmatpush1.msra.mxu0 %v1588
    %1740 = vmatprep.subr.mxu0 0.0
    %1741 = vmatpush1.msra.mxu0 %v1589
    %1742 = vmatprep.subr.mxu0 0.0
    %1743 = vmatpush1.msra.mxu0 %v1590
    %1744 = vmatprep.subr.mxu0 0.0
    %1745 = vmatpush1.msra.mxu0 %v1591
    %1746 = vmatprep.subr.mxu0 0.0
    %1747 = vmatpush1.msra.mxu0 %v1592
    %1748 = vmatprep.subr.mxu0 0.0
    %1749 = vmatpush1.msra.mxu0 %v1593
    %1750 = vmatprep.subr.mxu0 0.0
    %1751 = vmatpush1.msra.mxu0 %v1594
    %1752 = vmatprep.subr.mxu0 0.0
    %1753 = vmatpush1.msra.mxu0 %v1595
    %1754 = vmatprep.subr.mxu0 0.0
    %1755 = vmatpush1.msra.mxu0 %v1596
    %1756 = vmatprep.subr.mxu0 0.0
    %1757 = vmatpush1.msra.mxu0 %v1597
    %1758 = vmatprep.subr.mxu0 0.0
    %1759 = vmatpush1.msra.mxu0 %v1598
    %1760 = vmatprep.subr.mxu0 0.0
    %1761 = vmatpush1.msra.mxu0 %v1599
    %1762 = vmatprep.subr.mxu0 0.0
    %1763 = vmatpush1.msra.mxu0 %v1600
    %1764 = vmatprep.subr.mxu0 0.0
    %1765 = vmatpush1.msra.mxu0 %v1601
    %1766 = vmatprep.subr.mxu0 0.0
    %1767 = vmatpush1.msra.mxu0 %v1602
    %1768 = vmatprep.subr.mxu0 0.0
    %1769 = vmatpush1.msra.mxu0 %v1603
    %1770 = vmatprep.subr.mxu0 0.0
    %1771 = vmatpush1.msra.mxu0 %v1604
    %1772 = vmatprep.subr.mxu0 0.0
    %1773 = vmatpush1.msra.mxu0 %v1605
    %1774 = vmatprep.mubr.f32.mxu0 %v1703
    %1775 = vmatmul.mubr.f32.gmra.mrb[0].mxu0 %v1702
    %v1776 = vpop.f32.mrb[0].mxu0
    %v1777 = vadd.f32 0.0, %v1776
    %v1778 = vpop.f32.mrb[0].mxu0
    %1779 = vdwg.mxu0
    %1780 = vmatprep.subr.mxu0 0.0
    %1781 = vmatpush1.msra.mxu0 %v1606
    %1782 = vmatprep.subr.mxu0 0.0
    %1783 = vmatpush1.msra.mxu0 %v1607
    %1784 = vmatprep.subr.mxu0 0.0
    %1785 = vmatpush1.msra.mxu0 %v1608
    %1786 = vmatprep.subr.mxu0 0.0
    %1787 = vmatpush1.msra.mxu0 %v1609
    %1788 = vmatprep.subr.mxu0 0.0
    %1789 = vmatpush1.msra.mxu0 %v1610
    %1790 = vmatprep.subr.mxu0 0.0
    %1791 = vmatpush1.msra.mxu0 %v1611
    %1792 = vmatprep.subr.mxu0 0.0
    %1793 = vmatpush1.msra.mxu0 %v1612
    %1794 = vmatprep.subr.mxu0 0.0
    %1795 = vmatpush1.msra.mxu0 %v1613
    %1796 = vmatprep.subr.mxu0 0.0
    %1797 = vmatpush1.msra.mxu0 %v1614
    %1798 = vmatprep.subr.mxu0 0.0
    %1799 = vmatpush1.msra.mxu0 %v1615
    %1800 = vmatprep.subr.mxu0 0.0
    %1801 = vmatpush1.msra.mxu0 %v1616
    %1802 = vmatprep.subr.mxu0 0.0
    %1803 = vmatpush1.msra.mxu0 %v1617
    %1804 = vmatprep.subr.mxu0 0.0
    %1805 = vmatpush1.msra.mxu0 %v1618
    %1806 = vmatprep.subr.mxu0 0.0
    %1807 = vmatpush1.msra.mxu0 %v1619
    %1808 = vmatprep.subr.mxu0 0.0
    %1809 = vmatpush1.msra.mxu0 %v1620
    %1810 = vmatprep.subr.mxu0 0.0
    %1811 = vmatpush1.msra.mxu0 %v1621
    %1812 = vmatprep.subr.mxu0 0.0
    %1813 = vmatpush1.msra.mxu0 %v1622
    %1814 = vmatprep.subr.mxu0 0.0
    %1815 = vmatpush1.msra.mxu0 %v1623
    %1816 = vmatprep.subr.mxu0 0.0
    %1817 = vmatpush1.msra.mxu0 %v1624
    %1818 = vmatprep.subr.mxu0 0.0
    %1819 = vmatpush1.msra.mxu0 %v1625
    %1820 = vmatprep.subr.mxu0 0.0
    %1821 = vmatpush1.msra.mxu0 %v1626
    %1822 = vmatprep.subr.mxu0 0.0
    %1823 = vmatpush1.msra.mxu0 %v1627
    %1824 = vmatprep.subr.mxu0 0.0
    %1825 = vmatpush1.msra.mxu0 %v1628
    %1826 = vmatprep.subr.mxu0 0.0
    %1827 = vmatpush1.msra.mxu0 %v1629
    %1828 = vmatprep.subr.mxu0 0.0
    %1829 = vmatpush1.msra.mxu0 %v1630
    %1830 = vmatprep.subr.mxu0 0.0
    %1831 = vmatpush1.msra.mxu0 %v1631
    %1832 = vmatprep.subr.mxu0 0.0
    %1833 = vmatpush1.msra.mxu0 %v1632
    %1834 = vmatprep.subr.mxu0 0.0
    %1835 = vmatpush1.msra.mxu0 %v1633
    %1836 = vmatprep.subr.mxu0 0.0
    %1837 = vmatpush1.msra.mxu0 %v1634
    %1838 = vmatprep.subr.mxu0 0.0
    %1839 = vmatpush1.msra.mxu0 %v1635
    %1840 = vmatprep.subr.mxu0 0.0
    %1841 = vmatpush1.msra.mxu0 %v1636
    %1842 = vmatprep.subr.mxu0 0.0
    %1843 = vmatpush1.msra.mxu0 %v1637
    %1844 = vmatprep.mubr.f32.mxu0 %v1705
    %1845 = vmatmul.mubr.f32.gmra.mrb[0].mxu0 %v1704
    %v1846 = vpop.f32.mrb[0].mxu0
    %v1847 = vadd.f32 %v1777, %v1846
    %v1848 = vpop.f32.mrb[0].mxu0
    %1849 = vdwg.mxu0
    %1850 = vmatprep.subr.mxu0 0.0
    %1851 = vmatpush1.msra.mxu0 %v1638
    %1852 = vmatprep.subr.mxu0 0.0
    %1853 = vmatpush1.msra.mxu0 %v1639
    %1854 = vmatprep.subr.mxu0 0.0
    %1855 = vmatpush1.msra.mxu0 %v1640
    %1856 = vmatprep.subr.mxu0 0.0
    %1857 = vmatpush1.msra.mxu0 %v1641
    %1858 = vmatprep.subr.mxu0 0.0
    %1859 = vmatpush1.msra.mxu0 %v1642
    %1860 = vmatprep.subr.mxu0 0.0
    %1861 = vmatpush1.msra.mxu0 %v1643
    %1862 = vmatprep.subr.mxu0 0.0
    %1863 = vmatpush1.msra.mxu0 %v1644
    %1864 = vmatprep.subr.mxu0 0.0
    %1865 = vmatpush1.msra.mxu0 %v1645
    %1866 = vmatprep.subr.mxu0 0.0
    %1867 = vmatpush1.msra.mxu0 %v1646
    %1868 = vmatprep.subr.mxu0 0.0
    %1869 = vmatpush1.msra.mxu0 %v1647
    %1870 = vmatprep.subr.mxu0 0.0
    %1871 = vmatpush1.msra.mxu0 %v1648
    %1872 = vmatprep.subr.mxu0 0.0
    %1873 = vmatpush1.msra.mxu0 %v1649
    %1874 = vmatprep.subr.mxu0 0.0
    %1875 = vmatpush1.msra.mxu0 %v1650
    %1876 = vmatprep.subr.mxu0 0.0
    %1877 = vmatpush1.msra.mxu0 %v1651
    %1878 = vmatprep.subr.mxu0 0.0
    %1879 = vmatpush1.msra.mxu0 %v1652
    %1880 = vmatprep.subr.mxu0 0.0
    %1881 = vmatpush1.msra.mxu0 %v1653
    %1882 = vmatprep.subr.mxu0 0.0
    %1883 = vmatpush1.msra.mxu0 %v1654
    %1884 = vmatprep.subr.mxu0 0.0
    %1885 = vmatpush1.msra.mxu0 %v1655
    %1886 = vmatprep.subr.mxu0 0.0
    %1887 = vmatpush1.msra.mxu0 %v1656
    %1888 = vmatprep.subr.mxu0 0.0
    %1889 = vmatpush1.msra.mxu0 %v1657
    %1890 = vmatprep.subr.mxu0 0.0
    %1891 = vmatpush1.msra.mxu0 %v1658
    %1892 = vmatprep.subr.mxu0 0.0
    %1893 = vmatpush1.msra.mxu0 %v1659
    %1894 = vmatprep.subr.mxu0 0.0
    %1895 = vmatpush1.msra.mxu0 %v1660
    %1896 = vmatprep.subr.mxu0 0.0
    %1897 = vmatpush1.msra.mxu0 %v1661
    %1898 = vmatprep.subr.mxu0 0.0
    %1899 = vmatpush1.msra.mxu0 %v1662
    %1900 = vmatprep.subr.mxu0 0.0
    %1901 = vmatpush1.msra.mxu0 %v1663
    %1902 = vmatprep.subr.mxu0 0.0
    %1903 = vmatpush1.msra.mxu0 %v1664
    %1904 = vmatprep.subr.mxu0 0.0
    %1905 = vmatpush1.msra.mxu0 %v1665
    %1906 = vmatprep.subr.mxu0 0.0
    %1907 = vmatpush1.msra.mxu0 %v1666
    %1908 = vmatprep.subr.mxu0 0.0
    %1909 = vmatpush1.msra.mxu0 %v1667
    %1910 = vmatprep.subr.mxu0 0.0
    %1911 = vmatpush1.msra.mxu0 %v1668
    %1912 = vmatprep.subr.mxu0 0.0
    %1913 = vmatpush1.msra.mxu0 %v1669
    %1914 = vmatprep.mubr.f32.mxu0 %v1707
    %1915 = vmatmul.mubr.f32.gmra.mrb[0].mxu0 %v1706
    %v1916 = vpop.f32.mrb[0].mxu0
    %v1917 = vadd.f32 %v1847, %v1916
    %v1918 = vpop.f32.mrb[0].mxu0
    %1919 = vdwg.mxu0
    %1920 = vmatprep.subr.mxu0 0.0
    %1921 = vmatpush1.msra.mxu0 %v1670
    %1922 = vmatprep.subr.mxu0 0.0
    %1923 = vmatpush1.msra.mxu0 %v1671
    %1924 = vmatprep.subr.mxu0 0.0
    %1925 = vmatpush1.msra.mxu0 %v1672
    %1926 = vmatprep.subr.mxu0 0.0
    %1927 = vmatpush1.msra.mxu0 %v1673
    %1928 = vmatprep.subr.mxu0 0.0
    %1929 = vmatpush1.msra.mxu0 %v1674
    %1930 = vmatprep.subr.mxu0 0.0
    %1931 = vmatpush1.msra.mxu0 %v1675
    %1932 = vmatprep.subr.mxu0 0.0
    %1933 = vmatpush1.msra.mxu0 %v1676
    %1934 = vmatprep.subr.mxu0 0.0
    %1935 = vmatpush1.msra.mxu0 %v1677
    %1936 = vmatprep.subr.mxu0 0.0
    %1937 = vmatpush1.msra.mxu0 %v1678
    %1938 = vmatprep.subr.mxu0 0.0
    %1939 = vmatpush1.msra.mxu0 %v1679
    %1940 = vmatprep.subr.mxu0 0.0
    %1941 = vmatpush1.msra.mxu0 %v1680
    %1942 = vmatprep.subr.mxu0 0.0
    %1943 = vmatpush1.msra.mxu0 %v1681
    %1944 = vmatprep.subr.mxu0 0.0
    %1945 = vmatpush1.msra.mxu0 %v1682
    %1946 = vmatprep.subr.mxu0 0.0
    %1947 = vmatpush1.msra.mxu0 %v1683
    %1948 = vmatprep.subr.mxu0 0.0
    %1949 = vmatpush1.msra.mxu0 %v1684
    %1950 = vmatprep.subr.mxu0 0.0
    %1951 = vmatpush1.msra.mxu0 %v1685
    %1952 = vmatprep.subr.mxu0 0.0
    %1953 = vmatpush1.msra.mxu0 %v1686
    %1954 = vmatprep.subr.mxu0 0.0
    %1955 = vmatpush1.msra.mxu0 %v1687
    %1956 = vmatprep.subr.mxu0 0.0
    %1957 = vmatpush1.msra.mxu0 %v1688
    %1958 = vmatprep.subr.mxu0 0.0
    %1959 = vmatpush1.msra.mxu0 %v1689
    %1960 = vmatprep.subr.mxu0 0.0
    %1961 = vmatpush1.msra.mxu0 %v1690
    %1962 = vmatprep.subr.mxu0 0.0
    %1963 = vmatpush1.msra.mxu0 %v1691
    %1964 = vmatprep.subr.mxu0 0.0
    %1965 = vmatpush1.msra.mxu0 %v1692
    %1966 = vmatprep.subr.mxu0 0.0
    %1967 = vmatpush1.msra.mxu0 %v1693
    %1968 = vmatprep.subr.mxu0 0.0
    %1969 = vmatpush1.msra.mxu0 %v1694
    %1970 = vmatprep.subr.mxu0 0.0
    %1971 = vmatpush1.msra.mxu0 %v1695
    %1972 = vmatprep.subr.mxu0 0.0
    %1973 = vmatpush1.msra.mxu0 %v1696
    %1974 = vmatprep.subr.mxu0 0.0
    %1975 = vmatpush1.msra.mxu0 %v1697
    %1976 = vmatprep.subr.mxu0 0.0
    %1977 = vmatpush1.msra.mxu0 %v1698
    %1978 = vmatprep.subr.mxu0 0.0
    %1979 = vmatpush1.msra.mxu0 %v1699
    %1980 = vmatprep.subr.mxu0 0.0
    %1981 = vmatpush1.msra.mxu0 %v1700
    %1982 = vmatprep.subr.mxu0 0.0
    %1983 = vmatpush1.msra.mxu0 %v1701
    %1984 = vmatprep.mubr.f32.mxu0 %v1709
    %1985 = vmatmul.mubr.f32.gmra.mrb[0].mxu0 %v1708
    %v1986 = vpop.f32.mrb[0].mxu0
    %v1987 = vadd.f32 %v1917, %v1986
    %v1988 = vpop.f32.mrb[0].mxu0
    %1989 = vdwg.mxu0
    %s1990 = sld [smem:[#allocation2 + $0x1]]
    %s1991 = sld [smem:[#allocation2]]
    %v1992 = vstv %s1991
    %v1993 = vmul.f32 %v1992, %v31
    %v1994 = vstv %s1990
    %v1995 = vadd.f32 %v1994, %v1993
    %v1996 = vadd.f32 %v1995, %v1987
    %1997 = vst [vmem:[#allocation5] sm:$0x1] %v1996
    // Predicated region
    $region22: #{tpu_custom_call.1} parent=1 // pred_check
      _
    $region23: #{tpu_custom_call.1} parent=1 // pred_check_branch
      %1999 = sbr.rel (0) target = $region25
    $region24: #{tpu_custom_call.1} parent=1 // pred_region
      %s2001 = ssub.s32 16, 16
      %2002 = vsyncadd [#allocation3], %s2001
      %s2004 = sshll.u32 [#allocation5], 4
      %s2005 = int_to_ptr.vmem [resolvable:$true] %s2004
      %2007 = dma.vmem_to_hbm [thread:$0]  %s2005, 16, %s4, [#allocation3]
    $region25: #{tpu_custom_call.1} parent=1 // pred_fallthru
      _
    // Predicated region
    $region26: #{tpu_custom_call.1} parent=1 // pred_check
      _
    $region27: #{tpu_custom_call.1} parent=1 // pred_check_branch
      %2009 = sbr.rel (0) target = $region29
    $region28: #{tpu_custom_call.1} parent=1 // pred_region
      %2010 = dma.done [#allocation3], 16
    $region29: #{tpu_custom_call.1} parent=1 // pred_fallthru
      _
    %2011 = vsyncpa [#allocation3], 1
    %2012 = vsyncpa [#allocation4], 1

</llo_original>
